<compile_context>
chip_gen: v7x
topology: tpu7x:2x2x1
jax: 0.10.0
libtpu: 0.0.40
codegen_flags: <defaults>
</compile_context>

<pallas_src>
import functools
import math
import numpy as np

import jax
import jax.numpy as jnp
from jax.experimental import pallas as pl
from jax.experimental.pallas import tpu as pltpu


# ----------------------------------------------------------------------------
# Fused Pallas kernel: qkv conv -> windowed attention (+RPE bias) -> out conv
# ----------------------------------------------------------------------------
def _fused_window_attention_kernel(x_ref, wqkv_ref, bqkv_ref, bias_ref,
                                   wout_ref, bout_ref, o_ref, *,
                                   ws, num_heads, head_dim):
    C = num_heads * head_dim
    L = ws * ws
    Wp = x_ref.shape[2]
    w_div = Wp // ws
    scale = 1.0 / math.sqrt(head_dim)

    # ---- to_qkv: 1x1 conv == per-pixel channel matmul over the whole strip.
    x = x_ref[0]                                          # (ws, Wp, C)
    rows = x.reshape(ws * Wp, C).astype(jnp.bfloat16)
    qkv = jnp.dot(rows, wqkv_ref[...], preferred_element_type=jnp.float32)
    qkv = qkv + bqkv_ref[...]                             # (ws*Wp, 3C) f32
    qkv = qkv.reshape(ws, Wp, 3 * C)

    # ---- feat_to_win folded in-kernel: gather the w_div windows of this
    # window-row into a leading batch axis (tile-aligned slices + concat,
    # no lane movement).
    if w_div > 1:
        qkv = jnp.concatenate(
            [qkv[:, j * ws:(j + 1) * ws, :].reshape(1, L, 3 * C)
             for j in range(w_div)], axis=0)              # (w_div, L, 3C)
    else:
        qkv = qkv.reshape(1, L, 3 * C)

    # ---- SDPA per head, batched over the w_div windows of the strip.
    head_outs = []
    for h in range(num_heads):
        q = qkv[:, :, h * head_dim:(h + 1) * head_dim]            # (w_div, L, Dh)
        k = qkv[:, :, C + h * head_dim:C + (h + 1) * head_dim]
        v = qkv[:, :, 2 * C + h * head_dim:2 * C + (h + 1) * head_dim]

        qb = (q * scale).astype(jnp.bfloat16)   # fold 1/sqrt(d) into q
        kb = k.astype(jnp.bfloat16)
        vb = v.astype(jnp.bfloat16)

        s = jnp.einsum('bld,bmd->blm', qb, kb,
                       preferred_element_type=jnp.float32)        # (w_div, L, L)
        s = s + bias_ref[h][None, :, :]

        # numerically-stable softmax over keys (f32); normalize AFTER the PV
        # matmul (fewer elements) with the approximate EUP reciprocal.
        m = jnp.max(s, axis=-1, keepdims=True)
        p = jnp.exp(s - m)
        denom = jnp.sum(p, axis=-1, keepdims=True)

        o = jnp.einsum('blm,bmd->bld', p.astype(jnp.bfloat16), vb,
                       preferred_element_type=jnp.float32)        # (w_div, L, Dh)
        head_outs.append(o * pl.reciprocal(denom, approx=True))

    # channels end up in (heads, c) order, exactly like win_to_feat.
    attn = (jnp.concatenate(head_outs, axis=-1)
            if num_heads > 1 else head_outs[0])                   # (w_div, L, C)

    # ---- to_out: 1x1 conv on every window pixel at once (1x1 conv commutes
    # with the spatial crop done by the wrapper, so semantics match PyTorch).
    y = jnp.dot(attn.reshape(w_div * L, C).astype(jnp.bfloat16),
                wout_ref[...], preferred_element_type=jnp.float32)
    y = (y + bout_ref[...]).astype(o_ref.dtype)                   # (w_div*L, C)

    # ---- win_to_feat folded in-kernel: scatter windows back into the NHWC
    # strip with full-C contiguous stores.
    for j in range(w_div):
        o_ref[0, :, j * ws:(j + 1) * ws, :] = (
            y[j * L:(j + 1) * L, :].reshape(ws, ws, C))


# ----------------------------------------------------------------------------
# Forward wrapper
# ----------------------------------------------------------------------------
def window_attention_forward(x, params, window_size, num_heads):
    """x: (B, C, H, W) float32 -> (B, C, H, W) float32 via one fused kernel."""
    B, C, h, w = x.shape
    ws = window_size
    assert C % num_heads == 0
    head_dim = C // num_heads
    L = ws * ws

    # NCHW -> NHWC once (module boundary only).
    x = jnp.transpose(x, (0, 2, 3, 1))

    # pad_to_win (reflect pad bottom/right; edge fallback for tiny inputs).
    pad_h = (ws - h % ws) % ws
    pad_w = (ws - w % ws) % ws
    if pad_h or pad_w:
        mode = "reflect" if (pad_h < h and pad_w < w) else "edge"
        x = jnp.pad(x, ((0, 0), (0, pad_h), (0, pad_w), (0, 0)), mode=mode)
    Hp, Wp = x.shape[1], x.shape[2]
    h_div = Hp // ws

    kernel = functools.partial(_fused_window_attention_kernel, ws=ws,
                               num_heads=num_heads, head_dim=head_dim)

    out = pl.pallas_call(
        kernel,
        out_shape=jax.ShapeDtypeStruct((B, Hp, Wp, C), x.dtype),
        grid=(B, h_div),
        in_specs=[
            # one window-row strip per step
            pl.BlockSpec((1, ws, Wp, C), lambda b, i: (b, i, 0, 0)),
            # weights / biases / RPE bias: constant index_map -> fetched once
            pl.BlockSpec((C, 3 * C), lambda b, i: (0, 0)),
            pl.BlockSpec((1, 3 * C), lambda b, i: (0, 0)),
            pl.BlockSpec((num_heads, L, L), lambda b, i: (0, 0, 0)),
            pl.BlockSpec((C, C), lambda b, i: (0, 0)),
            pl.BlockSpec((1, C), lambda b, i: (0, 0)),
        ],
        out_specs=pl.BlockSpec((1, ws, Wp, C), lambda b, i: (b, i, 0, 0)),
        compiler_params=pltpu.CompilerParams(
            dimension_semantics=("parallel", "parallel")),
    )(x, params["w_qkv_t"], params["b_qkv"], params["rpe_bias"],
      params["w_out_t"], params["b_out"])

    # crop the window padding, back to NCHW (conv-then-crop == crop-then-conv
    # for a 1x1 conv, so this matches the PyTorch order exactly).
    out = out[:, :h, :w, :]
    return jnp.transpose(out, (0, 3, 1, 2))


# ----------------------------------------------------------------------------
# Parameters
# ----------------------------------------------------------------------------
def build_rel_idx(ws):
    """(L, L) int table of relative-position indices, L = ws*ws."""
    L = ws * ws
    coords = np.arange(L)
    ch = coords // ws
    cw = coords % ws
    rel_h = ch[None, :] - ch[:, None] + ws - 1   # k_h - q_h + ws - 1
    rel_w = cw[None, :] - cw[:, None] + ws - 1   # k_w - q_w + ws - 1
    return rel_h * (2 * ws - 1) + rel_w


def init_window_attention_params(key, dim, window_size, num_heads):
    """PyTorch-layout parameters (1x1 Conv2d weights squeezed to 2-D)."""
    ws = window_size
    k1, k2, k3, k4, k5 = jax.random.split(key, 5)
    return {
        "w_qkv": jax.random.normal(k1, (3 * dim, dim), jnp.float32) * 0.05,
        "b_qkv": jax.random.normal(k2, (3 * dim,), jnp.float32) * 0.05,
        "w_out": jax.random.normal(k3, (dim, dim), jnp.float32) * 0.05,
        "b_out": jax.random.normal(k4, (dim,), jnp.float32) * 0.05,
        # larger than the module's 0.001 init so the demo softmax is
        # non-uniform and the correctness check below is meaningful
        "rpe_table": jax.random.normal(
            k5, (num_heads, (2 * ws - 1) * (2 * ws - 1)), jnp.float32) * 0.1,
    }


def prepare_kernel_params(raw, window_size):
    """One-time prep hoisted out of the hot path: pre-transpose the 1x1 conv
    weights to (Cin, Cout) bf16 and pre-gather the RPE bias to (heads, L, L)."""
    rel_idx = jnp.asarray(build_rel_idx(window_size))
    return {
        "w_qkv_t": jnp.asarray(raw["w_qkv"]).T.astype(jnp.bfloat16),
        "b_qkv": jnp.asarray(raw["b_qkv"]).reshape(1, -1).astype(jnp.float32),
        "w_out_t": jnp.asarray(raw["w_out"]).T.astype(jnp.bfloat16),
        "b_out": jnp.asarray(raw["b_out"]).reshape(1, -1).astype(jnp.float32),
        "rpe_bias": jnp.asarray(raw["rpe_table"])[:, rel_idx].astype(jnp.float32),
    }


# ----------------------------------------------------------------------------
# Pure-JAX f32 reference (PyTorch module semantics) for a correctness check
# ----------------------------------------------------------------------------
def window_attention_reference(x, raw, window_size, num_heads):
    B, C, h, w = x.shape
    ws = window_size
    D = C // num_heads
    L = ws * ws
    pad_h = (ws - h % ws) % ws
    pad_w = (ws - w % ws) % ws
    xp = jnp.pad(x, ((0, 0), (0, 0), (0, pad_h), (0, pad_w)), mode="reflect")
    Hp, Wp = xp.shape[2], xp.shape[3]
    h_div, w_div = Hp // ws, Wp // ws

    qkv = (jnp.einsum('bchw,oc->bohw', xp, raw["w_qkv"])
           + raw["b_qkv"][None, :, None, None])
    t = qkv.reshape(B, 3, num_heads, D, h_div, ws, w_div, ws)
    t = jnp.transpose(t, (1, 0, 4, 6, 2, 5, 7, 3))
    t = t.reshape(3, B * h_div * w_div, num_heads, L, D)
    q, k, v = t[0], t[1], t[2]

    bias = raw["rpe_table"][:, jnp.asarray(build_rel_idx(ws))]     # (H, L, L)
    s = jnp.einsum('nhld,nhmd->nhlm', q, k) / math.sqrt(D) + bias[None]
    p = jax.nn.softmax(s, axis=-1)
    o = jnp.einsum('nhlm,nhmd->nhld', p, v)
    o = o.reshape(B, h_div, w_div, num_heads, ws, ws, D)
    o = jnp.transpose(o, (0, 3, 6, 1, 4, 2, 5)).reshape(B, C, Hp, Wp)
    o = o[:, :, :h, :w]
    return (jnp.einsum('bchw,oc->bohw', o, raw["w_out"])
            + raw["b_out"][None, :, None, None])


# ----------------------------------------------------------------------------
# main
# ----------------------------------------------------------------------------
if __name__ == "__main__":
    dim = 16
    window_size = 8
    num_heads = 2
    B, H, W = 2, 14, 14   # non-multiple of window_size exercises pad/crop

    key = jax.random.PRNGKey(0)
    kx, kp = jax.random.split(key)
    x = jax.random.normal(kx, (B, dim, H, W), jnp.float32)
    raw = init_window_attention_params(kp, dim, window_size, num_heads)
    params = prepare_kernel_params(raw, window_size)

    fwd = jax.jit(lambda x, p: window_attention_forward(
        x, p, window_size, num_heads))
    out = fwd(x, params)
    jax.block_until_ready(out)

    assert out.shape == (B, dim, H, W), out.shape
    assert bool(jnp.all(jnp.isfinite(out))), "non-finite output"

    # correctness vs the pure-JAX f32 reference (kernel uses bf16 MXU operands
    # and an approximate reciprocal, so allow a small tolerance)
    ref = window_attention_reference(x, raw, window_size, num_heads)
    err = float(jnp.max(jnp.abs(out - ref)))
    assert err < 3e-2, f"max abs error {err}"
    print("KERNEL_OK")
</pallas_src>

<mosaic_0001>
module attributes {stable_mosaic.version = 11 : i64} {
  func.func @_fused_window_attention_kernel(%arg0: i32, %arg1: i32, %arg2: memref<1x8x16x16xf32, #tpu.memory_space<vmem>>, %arg3: memref<16x48xbf16, #tpu.memory_space<vmem>>, %arg4: memref<1x48xf32, #tpu.memory_space<vmem>>, %arg5: memref<2x64x64xf32, #tpu.memory_space<vmem>>, %arg6: memref<16x16xbf16, #tpu.memory_space<vmem>>, %arg7: memref<1x16xf32, #tpu.memory_space<vmem>>, %arg8: memref<1x8x16x16xf32, #tpu.memory_space<vmem>>) attributes {dimension_semantics = [#tpu.dimension_semantics<parallel>, #tpu.dimension_semantics<parallel>], iteration_bounds = array<i64: 2, 2>, scalar_prefetch = 0 : i64, scratch_operands = 0 : i64, tpu.core_type = #tpu.core_type<tc>, window_params = [{transform_indices = @transform_0, window_bounds = array<i64: 1, 8, 16, 16>}, {pipeline_mode = #tpu.pipeline_mode<synchronous>, transform_indices = @transform_1, window_bounds = array<i64: 16, 48>}, {pipeline_mode = #tpu.pipeline_mode<synchronous>, transform_indices = @transform_2, window_bounds = array<i64: 1, 48>}, {pipeline_mode = #tpu.pipeline_mode<synchronous>, transform_indices = @transform_3, window_bounds = array<i64: 2, 64, 64>}, {pipeline_mode = #tpu.pipeline_mode<synchronous>, transform_indices = @transform_4, window_bounds = array<i64: 16, 16>}, {pipeline_mode = #tpu.pipeline_mode<synchronous>, transform_indices = @transform_5, window_bounds = array<i64: 1, 16>}, {transform_indices = @transform_6, window_bounds = array<i64: 1, 8, 16, 16>}]} {
    %c0 = arith.constant 0 : index
    %c0_0 = arith.constant 0 : index
    %c0_1 = arith.constant 0 : index
    %c0_2 = arith.constant 0 : index
    %0 = vector.load %arg2[%c0, %c0_0, %c0_1, %c0_2] : memref<1x8x16x16xf32, #tpu.memory_space<vmem>>, vector<1x8x16x16xf32>
    %1 = vector.shape_cast %0 : vector<1x8x16x16xf32> to vector<8x16x16xf32>
    %2 = vector.shape_cast %1 : vector<8x16x16xf32> to vector<128x16xf32>
    %3 = arith.truncf %2 : vector<128x16xf32> to vector<128x16xbf16>
    %c0_3 = arith.constant 0 : index
    %c0_4 = arith.constant 0 : index
    %4 = vector.load %arg3[%c0_3, %c0_4] : memref<16x48xbf16, #tpu.memory_space<vmem>>, vector<16x48xbf16>
    %cst = arith.constant dense<0.000000e+00> : vector<128x48xf32>
    %5 = tpu.matmul %3, %4, %cst {dimension_numbers = #tpu.dot_dimension_numbers<[1], [0], [0], [1], [0, 0, 1, 1], [], []>} : vector<128x16xbf16>, vector<16x48xbf16>, vector<128x48xf32> -> vector<128x48xf32>
    %c0_5 = arith.constant 0 : index
    %c0_6 = arith.constant 0 : index
    %6 = vector.load %arg4[%c0_5, %c0_6] : memref<1x48xf32, #tpu.memory_space<vmem>>, vector<1x48xf32>
    %7 = vector.broadcast %6 : vector<1x48xf32> to vector<128x48xf32>
    %8 = arith.addf %5, %7 : vector<128x48xf32>
    %9 = vector.shape_cast %8 : vector<128x48xf32> to vector<8x16x48xf32>
    %10 = vector.extract_strided_slice %9 {offsets = [0, 0, 0], sizes = [8, 8, 48], strides = [1, 1, 1]} : vector<8x16x48xf32> to vector<8x8x48xf32>
    %11 = vector.shape_cast %10 : vector<8x8x48xf32> to vector<1x64x48xf32>
    %12 = vector.extract_strided_slice %9 {offsets = [0, 8, 0], sizes = [8, 8, 48], strides = [1, 1, 1]} : vector<8x16x48xf32> to vector<8x8x48xf32>
    %13 = vector.shape_cast %12 : vector<8x8x48xf32> to vector<1x64x48xf32>
    %14 = tpu.concatenate %11, %13 in 0 : vector<1x64x48xf32>, vector<1x64x48xf32> -> vector<2x64x48xf32>
    %15 = vector.extract_strided_slice %14 {offsets = [0, 0, 0], sizes = [2, 64, 8], strides = [1, 1, 1]} : vector<2x64x48xf32> to vector<2x64x8xf32>
    %16 = vector.extract_strided_slice %14 {offsets = [0, 0, 16], sizes = [2, 64, 8], strides = [1, 1, 1]} : vector<2x64x48xf32> to vector<2x64x8xf32>
    %17 = vector.extract_strided_slice %14 {offsets = [0, 0, 32], sizes = [2, 64, 8], strides = [1, 1, 1]} : vector<2x64x48xf32> to vector<2x64x8xf32>
    %cst_7 = arith.constant 0.353553385 : f32
    %18 = vector.broadcast %cst_7 : f32 to vector<2x64x8xf32>
    %19 = arith.mulf %15, %18 : vector<2x64x8xf32>
    %20 = arith.truncf %19 : vector<2x64x8xf32> to vector<2x64x8xbf16>
    %21 = arith.truncf %16 : vector<2x64x8xf32> to vector<2x64x8xbf16>
    %22 = arith.truncf %17 : vector<2x64x8xf32> to vector<2x64x8xbf16>
    "tpu.trace_start"() <{level = 10 : i32, message = "bld,bmd->blm"}> : () -> ()
    %cst_8 = arith.constant dense<0.000000e+00> : vector<2x64x64xf32>
    %23 = tpu.matmul %20, %21, %cst_8 {dimension_numbers = #tpu.dot_dimension_numbers<[2], [2], [1], [1], [0, 0, 0, 1, 1, 1], [0], [0]>} : vector<2x64x8xbf16>, vector<2x64x8xbf16>, vector<2x64x64xf32> -> vector<2x64x64xf32>
    "tpu.trace_stop"() : () -> ()
    %c0_9 = arith.constant 0 : index
    %c0_10 = arith.constant 0 : index
    %c0_11 = arith.constant 0 : index
    %24 = vector.load %arg5[%c0_9, %c0_10, %c0_11] : memref<2x64x64xf32, #tpu.memory_space<vmem>>, vector<1x64x64xf32>
    %25 = vector.shape_cast %24 : vector<1x64x64xf32> to vector<64x64xf32>
    %26 = vector.shape_cast %25 : vector<64x64xf32> to vector<1x64x64xf32>
    %27 = vector.broadcast %26 : vector<1x64x64xf32> to vector<2x64x64xf32>
    %28 = arith.addf %23, %27 : vector<2x64x64xf32>
    %cst_12 = arith.constant dense<0xFF800000> : vector<2x64xf32>
    %29 = vector.multi_reduction <maximumf>, %28, %cst_12 [2] : vector<2x64x64xf32> to vector<2x64xf32>
    %30 = vector.shape_cast %29 : vector<2x64xf32> to vector<2x64x1xf32>
    %31 = vector.broadcast %30 : vector<2x64x1xf32> to vector<2x64x64xf32>
    %32 = arith.subf %28, %31 : vector<2x64x64xf32>
    %33 = math.exp %32 : vector<2x64x64xf32>
    %cst_13 = arith.constant dense<0.000000e+00> : vector<2x64xf32>
    %34 = vector.multi_reduction <add>, %33, %cst_13 [2] : vector<2x64x64xf32> to vector<2x64xf32>
    %35 = vector.shape_cast %34 : vector<2x64xf32> to vector<2x64x1xf32>
    %36 = arith.truncf %33 : vector<2x64x64xf32> to vector<2x64x64xbf16>
    "tpu.trace_start"() <{level = 10 : i32, message = "blm,bmd->bld"}> : () -> ()
    %cst_14 = arith.constant dense<0.000000e+00> : vector<2x64x8xf32>
    %37 = tpu.matmul %36, %22, %cst_14 {dimension_numbers = #tpu.dot_dimension_numbers<[2], [1], [1], [2], [0, 0, 0, 1, 1, 2], [0], [0]>} : vector<2x64x64xbf16>, vector<2x64x8xbf16>, vector<2x64x8xf32> -> vector<2x64x8xf32>
    "tpu.trace_stop"() : () -> ()
    %38 = tpu.reciprocal %35 {approx = true} : vector<2x64x1xf32> -> vector<2x64x1xf32>
    %39 = vector.broadcast %38 : vector<2x64x1xf32> to vector<2x64x8xf32>
    %40 = arith.mulf %37, %39 : vector<2x64x8xf32>
    %41 = vector.extract_strided_slice %14 {offsets = [0, 0, 8], sizes = [2, 64, 8], strides = [1, 1, 1]} : vector<2x64x48xf32> to vector<2x64x8xf32>
    %42 = vector.extract_strided_slice %14 {offsets = [0, 0, 24], sizes = [2, 64, 8], strides = [1, 1, 1]} : vector<2x64x48xf32> to vector<2x64x8xf32>
    %43 = vector.extract_strided_slice %14 {offsets = [0, 0, 40], sizes = [2, 64, 8], strides = [1, 1, 1]} : vector<2x64x48xf32> to vector<2x64x8xf32>
    %cst_15 = arith.constant 0.353553385 : f32
    %44 = vector.broadcast %cst_15 : f32 to vector<2x64x8xf32>
    %45 = arith.mulf %41, %44 : vector<2x64x8xf32>
    %46 = arith.truncf %45 : vector<2x64x8xf32> to vector<2x64x8xbf16>
    %47 = arith.truncf %42 : vector<2x64x8xf32> to vector<2x64x8xbf16>
    %48 = arith.truncf %43 : vector<2x64x8xf32> to vector<2x64x8xbf16>
    "tpu.trace_start"() <{level = 10 : i32, message = "bld,bmd->blm"}> : () -> ()
    %cst_16 = arith.constant dense<0.000000e+00> : vector<2x64x64xf32>
    %49 = tpu.matmul %46, %47, %cst_16 {dimension_numbers = #tpu.dot_dimension_numbers<[2], [2], [1], [1], [0, 0, 0, 1, 1, 1], [0], [0]>} : vector<2x64x8xbf16>, vector<2x64x8xbf16>, vector<2x64x64xf32> -> vector<2x64x64xf32>
    "tpu.trace_stop"() : () -> ()
    %c1 = arith.constant 1 : index
    %c0_17 = arith.constant 0 : index
    %c0_18 = arith.constant 0 : index
    %50 = vector.load %arg5[%c1, %c0_17, %c0_18] : memref<2x64x64xf32, #tpu.memory_space<vmem>>, vector<1x64x64xf32>
    %51 = vector.shape_cast %50 : vector<1x64x64xf32> to vector<64x64xf32>
    %52 = vector.shape_cast %51 : vector<64x64xf32> to vector<1x64x64xf32>
    %53 = vector.broadcast %52 : vector<1x64x64xf32> to vector<2x64x64xf32>
    %54 = arith.addf %49, %53 : vector<2x64x64xf32>
    %cst_19 = arith.constant dense<0xFF800000> : vector<2x64xf32>
    %55 = vector.multi_reduction <maximumf>, %54, %cst_19 [2] : vector<2x64x64xf32> to vector<2x64xf32>
    %56 = vector.shape_cast %55 : vector<2x64xf32> to vector<2x64x1xf32>
    %57 = vector.broadcast %56 : vector<2x64x1xf32> to vector<2x64x64xf32>
    %58 = arith.subf %54, %57 : vector<2x64x64xf32>
    %59 = math.exp %58 : vector<2x64x64xf32>
    %cst_20 = arith.constant dense<0.000000e+00> : vector<2x64xf32>
    %60 = vector.multi_reduction <add>, %59, %cst_20 [2] : vector<2x64x64xf32> to vector<2x64xf32>
    %61 = vector.shape_cast %60 : vector<2x64xf32> to vector<2x64x1xf32>
    %62 = arith.truncf %59 : vector<2x64x64xf32> to vector<2x64x64xbf16>
    "tpu.trace_start"() <{level = 10 : i32, message = "blm,bmd->bld"}> : () -> ()
    %cst_21 = arith.constant dense<0.000000e+00> : vector<2x64x8xf32>
    %63 = tpu.matmul %62, %48, %cst_21 {dimension_numbers = #tpu.dot_dimension_numbers<[2], [1], [1], [2], [0, 0, 0, 1, 1, 2], [0], [0]>} : vector<2x64x64xbf16>, vector<2x64x8xbf16>, vector<2x64x8xf32> -> vector<2x64x8xf32>
    "tpu.trace_stop"() : () -> ()
    %64 = tpu.reciprocal %61 {approx = true} : vector<2x64x1xf32> -> vector<2x64x1xf32>
    %65 = vector.broadcast %64 : vector<2x64x1xf32> to vector<2x64x8xf32>
    %66 = arith.mulf %63, %65 : vector<2x64x8xf32>
    %67 = tpu.concatenate %40, %66 in 2 : vector<2x64x8xf32>, vector<2x64x8xf32> -> vector<2x64x16xf32>
    %68 = vector.shape_cast %67 : vector<2x64x16xf32> to vector<128x16xf32>
    %69 = arith.truncf %68 : vector<128x16xf32> to vector<128x16xbf16>
    %c0_22 = arith.constant 0 : index
    %c0_23 = arith.constant 0 : index
    %70 = vector.load %arg6[%c0_22, %c0_23] : memref<16x16xbf16, #tpu.memory_space<vmem>>, vector<16x16xbf16>
    %cst_24 = arith.constant dense<0.000000e+00> : vector<128x16xf32>
    %71 = tpu.matmul %69, %70, %cst_24 {dimension_numbers = #tpu.dot_dimension_numbers<[1], [0], [0], [1], [0, 0, 1, 1], [], []>} : vector<128x16xbf16>, vector<16x16xbf16>, vector<128x16xf32> -> vector<128x16xf32>
    %c0_25 = arith.constant 0 : index
    %c0_26 = arith.constant 0 : index
    %72 = vector.load %arg7[%c0_25, %c0_26] : memref<1x16xf32, #tpu.memory_space<vmem>>, vector<1x16xf32>
    %73 = vector.broadcast %72 : vector<1x16xf32> to vector<128x16xf32>
    %74 = arith.addf %71, %73 : vector<128x16xf32>
    %75 = vector.extract_strided_slice %74 {offsets = [0, 0], sizes = [64, 16], strides = [1, 1]} : vector<128x16xf32> to vector<64x16xf32>
    %76 = vector.shape_cast %75 : vector<64x16xf32> to vector<8x8x16xf32>
    %c0_27 = arith.constant 0 : index
    %c0_28 = arith.constant 0 : index
    %c0_29 = arith.constant 0 : index
    %c0_30 = arith.constant 0 : index
    %77 = vector.load %arg8[%c0_27, %c0_28, %c0_29, %c0_30] : memref<1x8x16x16xf32, #tpu.memory_space<vmem>>, vector<1x8x8x16xf32>
    %78 = vector.shape_cast %77 : vector<1x8x8x16xf32> to vector<8x8x16xf32>
    %79 = vector.shape_cast %76 : vector<8x8x16xf32> to vector<1x8x8x16xf32>
    tpu.vector_store %arg8[%c0_27, %c0_28, %c0_29, %c0_30], %79 {strides = array<i32>} : memref<1x8x16x16xf32, #tpu.memory_space<vmem>>, vector<1x8x8x16xf32>,
    %80 = vector.extract_strided_slice %74 {offsets = [64, 0], sizes = [64, 16], strides = [1, 1]} : vector<128x16xf32> to vector<64x16xf32>
    %81 = vector.shape_cast %80 : vector<64x16xf32> to vector<8x8x16xf32>
    %c0_31 = arith.constant 0 : index
    %c0_32 = arith.constant 0 : index
    %c8 = arith.constant 8 : index
    %c0_33 = arith.constant 0 : index
    %82 = vector.load %arg8[%c0_31, %c0_32, %c8, %c0_33] : memref<1x8x16x16xf32, #tpu.memory_space<vmem>>, vector<1x8x8x16xf32>
    %83 = vector.shape_cast %82 : vector<1x8x8x16xf32> to vector<8x8x16xf32>
    %84 = vector.shape_cast %81 : vector<8x8x16xf32> to vector<1x8x8x16xf32>
    tpu.vector_store %arg8[%c0_31, %c0_32, %c8, %c0_33], %84 {strides = array<i32>} : memref<1x8x16x16xf32, #tpu.memory_space<vmem>>, vector<1x8x8x16xf32>,
    return
  }
  func.func @transform_0(%arg0: i32, %arg1: i32) -> (i32, i32, i32, i32) {
    %c0_i32 = arith.constant 0 : i32
    %c0_i32_0 = arith.constant 0 : i32
    %c0_i32_1 = arith.constant 0 : i32
    return %arg0, %arg1, %c0_i32, %c0_i32_0 : i32, i32, i32, i32
  }
  func.func @transform_1(%arg0: i32, %arg1: i32) -> (i32, i32) {
    %c0_i32 = arith.constant 0 : i32
    %c0_i32_0 = arith.constant 0 : i32
    %c0_i32_1 = arith.constant 0 : i32
    return %c0_i32, %c0_i32_0 : i32, i32
  }
  func.func @transform_2(%arg0: i32, %arg1: i32) -> (i32, i32) {
    %c0_i32 = arith.constant 0 : i32
    %c0_i32_0 = arith.constant 0 : i32
    %c0_i32_1 = arith.constant 0 : i32
    return %c0_i32, %c0_i32_0 : i32, i32
  }
  func.func @transform_3(%arg0: i32, %arg1: i32) -> (i32, i32, i32) {
    %c0_i32 = arith.constant 0 : i32
    %c0_i32_0 = arith.constant 0 : i32
    %c0_i32_1 = arith.constant 0 : i32
    %c0_i32_2 = arith.constant 0 : i32
    return %c0_i32, %c0_i32_0, %c0_i32_1 : i32, i32, i32
  }
  func.func @transform_4(%arg0: i32, %arg1: i32) -> (i32, i32) {
    %c0_i32 = arith.constant 0 : i32
    %c0_i32_0 = arith.constant 0 : i32
    %c0_i32_1 = arith.constant 0 : i32
    return %c0_i32, %c0_i32_0 : i32, i32
  }
  func.func @transform_5(%arg0: i32, %arg1: i32) -> (i32, i32) {
    %c0_i32 = arith.constant 0 : i32
    %c0_i32_0 = arith.constant 0 : i32
    %c0_i32_1 = arith.constant 0 : i32
    return %c0_i32, %c0_i32_0 : i32, i32
  }
  func.func @transform_6(%arg0: i32, %arg1: i32) -> (i32, i32, i32, i32) {
    %c0_i32 = arith.constant 0 : i32
    %c0_i32_0 = arith.constant 0 : i32
    %c0_i32_1 = arith.constant 0 : i32
    return %arg0, %arg1, %c0_i32, %c0_i32_0 : i32, i32, i32, i32
  }
}

</mosaic_0001>

<llo_original>
// kernel: _lambda_.1
$region0: #{_lambda_.1}
  #allocation0 [shape = 'u32[]', space=smem, size = 0x4, offset = 0x4, fixed_abs, tag = 'smem constant byte address 0x4 - core index']
  #allocation1 [shape = 'u32[144,128]{1,0:T(1,128)}', space=vmem, size = 0x12000, scoped, tag = 'internal scratch']
  %s0 = inlined_call_operand.vmem [shape: f32[2,16,16,16], index: 0, kind: input, shape index: {}]
  %s1 = inlined_call_operand.vmem [shape: bf16[16,48], index: 1, kind: input, shape index: {}]
  %s2 = inlined_call_operand.vmem [shape: f32[1,48], index: 2, kind: input, shape index: {}]
  %s3 = inlined_call_operand.vmem [shape: f32[2,64,64], index: 3, kind: input, shape index: {}]
  %s4 = inlined_call_operand.vmem [shape: bf16[16,16], index: 4, kind: input, shape index: {}]
  %s5 = inlined_call_operand.vmem [shape: f32[1,16], index: 5, kind: input, shape index: {}]
  %s6 = inlined_call_operand.vmem [shape: f32[2,16,16,16], index: 6, kind: output, shape index: {}]
  %s7 = sld [smem:[#allocation0]]
  $region57: #{_lambda_.1} parent=0
    _
  %s9 = ssub.s32 1, %s7
  %s10 = scalar_select 0, %s9, %s7
  loop: start=0, step=1, limit=6
  $region2: #{_lambda_.1} parent=0 // loop_pre_header
    _
  $region3: #{_lambda_.1} parent=0 // loop_header
    %s12 = sphi 0, %s16
    %p13 = scmp.ge.s32.totalorder %s12, 6
    %s19 = sphi 0, %s31
    %s20 = sphi 0, %s27
    %s21 = sphi 0, %s19
    %s22 = sphi 0, %s20
    %s23 = sphi 0, %s21
    %s24 = sphi 0, %s22
    %s36 = sphi 0, %s38
    %s39 = sphi 0, %s36
    %s40 = sphi 0, %s39
    %s56 = sphi 0, %s40
    %s60 = sphi 0, %s60
    %s62 = sphi 0, %s60
    %s63 = sphi 0, %s62
    %s77 = sphi 0, %s63
    %s81 = sphi 0, %s81
    %s83 = sphi 0, %s81
    %s84 = sphi 0, %s83
    %s98 = sphi 0, %s84
    %s102 = sphi 0, %s102
    %s104 = sphi 0, %s102
    %s105 = sphi 0, %s104
    %s119 = sphi 0, %s105
    %s123 = sphi 0, %s123
    %s125 = sphi 0, %s123
    %s126 = sphi 0, %s125
    %s140 = sphi 0, %s126
    %s144 = sphi 0, %s144
    %s146 = sphi 0, %s144
    %s147 = sphi 0, %s146
    %s161 = sphi 0, %s147
    %s169 = sphi 0, %s171
    %s172 = sphi 0, %s169
    %s173 = sphi 0, %s172
    %s189 = sphi 0, %s173
  $region4: #{_lambda_.1} parent=0 // loop_header_branch
    %15 = sbr.rel (%p13) target = $region8
  $region5: #{_lambda_.1} parent=0 // loop_body
    %s17 = ssub.s32 %s12, 1
    %s18 = ssub.s32 %s12, 2
    %s25 = sadd.s32 1, %s20
    %p26 = scmp.ge.s32.totalorder %s25, 2
    %s27 = scalar_select %p26, 0, %s25
    %s28 = sadd.s32 1, %s19
    %s29 = scalar_select %p26, %s28, %s19
    %p30 = scmp.ge.s32.totalorder %s29, 2
    %s31 = scalar_select %p30, 0, %s29
    %s32 = ssub.s32 %s19, %s31
    %s33 = ssub.s32 %s20, %s27
    %s34 = sor.u32 %s32, %s33
    %p35 = scmp.eq.s32.totalorder %s34, 0
    %s37 = sadd.s32 %s36, 1
    %s38 = scalar_select %p35, %s36, %s37
    %p41 = pneg %p35
    %p42 = scmp.eq.s32.totalorder %s12, 3
    %p43 = por %p41, %p42
    %p44 = scmp.ne.s32.totalorder %s36, %s39
    %p45 = scmp.eq.s32.totalorder %s12, 0
    %p46 = por %p44, %p45
    %p47 = scmp.ne.s32.totalorder %s36, %s39
    %p48 = scmp.eq.s32.totalorder %s17, 3
    %p49 = por %p47, %p48
    %p50 = scmp.ne.s32.totalorder %s39, %s40
    %p51 = scmp.eq.s32.totalorder %s17, 0
    %p52 = por %p50, %p51
    %p53 = scmp.ne.s32.totalorder %s39, %s40
    %p54 = scmp.eq.s32.totalorder %s18, 3
    %p55 = por %p53, %p54
    %p57 = scmp.ne.s32.totalorder %s40, %s56
    %p58 = scmp.eq.s32.totalorder %s18, 0
    %p59 = por %p57, %p58
    %s61 = sadd.s32 %s60, 1
    %p64 = scmp.eq.s32.totalorder %s12, 3
    %p65 = scmp.ne.s32.totalorder %s60, %s62
    %p66 = scmp.eq.s32.totalorder %s12, 0
    %p67 = por %p65, %p66
    %p68 = scmp.ne.s32.totalorder %s60, %s62
    %p69 = scmp.eq.s32.totalorder %s17, 3
    %p70 = por %p68, %p69
    %p71 = scmp.ne.s32.totalorder %s62, %s63
    %p72 = scmp.eq.s32.totalorder %s17, 0
    %p73 = por %p71, %p72
    %p74 = scmp.ne.s32.totalorder %s62, %s63
    %p75 = scmp.eq.s32.totalorder %s18, 3
    %p76 = por %p74, %p75
    %p78 = scmp.ne.s32.totalorder %s63, %s77
    %p79 = scmp.eq.s32.totalorder %s18, 0
    %p80 = por %p78, %p79
    %s82 = sadd.s32 %s81, 1
    %p85 = scmp.eq.s32.totalorder %s12, 3
    %p86 = scmp.ne.s32.totalorder %s81, %s83
    %p87 = scmp.eq.s32.totalorder %s12, 0
    %p88 = por %p86, %p87
    %p89 = scmp.ne.s32.totalorder %s81, %s83
    %p90 = scmp.eq.s32.totalorder %s17, 3
    %p91 = por %p89, %p90
    %p92 = scmp.ne.s32.totalorder %s83, %s84
    %p93 = scmp.eq.s32.totalorder %s17, 0
    %p94 = por %p92, %p93
    %p95 = scmp.ne.s32.totalorder %s83, %s84
    %p96 = scmp.eq.s32.totalorder %s18, 3
    %p97 = por %p95, %p96
    %p99 = scmp.ne.s32.totalorder %s84, %s98
    %p100 = scmp.eq.s32.totalorder %s18, 0
    %p101 = por %p99, %p100
    %s103 = sadd.s32 %s102, 1
    %p106 = scmp.eq.s32.totalorder %s12, 3
    %p107 = scmp.ne.s32.totalorder %s102, %s104
    %p108 = scmp.eq.s32.totalorder %s12, 0
    %p109 = por %p107, %p108
    %p110 = scmp.ne.s32.totalorder %s102, %s104
    %p111 = scmp.eq.s32.totalorder %s17, 3
    %p112 = por %p110, %p111
    %p113 = scmp.ne.s32.totalorder %s104, %s105
    %p114 = scmp.eq.s32.totalorder %s17, 0
    %p115 = por %p113, %p114
    %p116 = scmp.ne.s32.totalorder %s104, %s105
    %p117 = scmp.eq.s32.totalorder %s18, 3
    %p118 = por %p116, %p117
    %p120 = scmp.ne.s32.totalorder %s105, %s119
    %p121 = scmp.eq.s32.totalorder %s18, 0
    %p122 = por %p120, %p121
    %s124 = sadd.s32 %s123, 1
    %p127 = scmp.eq.s32.totalorder %s12, 3
    %p128 = scmp.ne.s32.totalorder %s123, %s125
    %p129 = scmp.eq.s32.totalorder %s12, 0
    %p130 = por %p128, %p129
    %p131 = scmp.ne.s32.totalorder %s123, %s125
    %p132 = scmp.eq.s32.totalorder %s17, 3
    %p133 = por %p131, %p132
    %p134 = scmp.ne.s32.totalorder %s125, %s126
    %p135 = scmp.eq.s32.totalorder %s17, 0
    %p136 = por %p134, %p135
    %p137 = scmp.ne.s32.totalorder %s125, %s126
    %p138 = scmp.eq.s32.totalorder %s18, 3
    %p139 = por %p137, %p138
    %p141 = scmp.ne.s32.totalorder %s126, %s140
    %p142 = scmp.eq.s32.totalorder %s18, 0
    %p143 = por %p141, %p142
    %s145 = sadd.s32 %s144, 1
    %p148 = scmp.eq.s32.totalorder %s12, 3
    %p149 = scmp.ne.s32.totalorder %s144, %s146
    %p150 = scmp.eq.s32.totalorder %s12, 0
    %p151 = por %p149, %p150
    %p152 = scmp.ne.s32.totalorder %s144, %s146
    %p153 = scmp.eq.s32.totalorder %s17, 3
    %p154 = por %p152, %p153
    %p155 = scmp.ne.s32.totalorder %s146, %s147
    %p156 = scmp.eq.s32.totalorder %s17, 0
    %p157 = por %p155, %p156
    %p158 = scmp.ne.s32.totalorder %s146, %s147
    %p159 = scmp.eq.s32.totalorder %s18, 3
    %p160 = por %p158, %p159
    %p162 = scmp.ne.s32.totalorder %s147, %s161
    %p163 = scmp.eq.s32.totalorder %s18, 0
    %p164 = por %p162, %p163
    %s165 = ssub.s32 %s19, %s31
    %s166 = ssub.s32 %s20, %s27
    %s167 = sor.u32 %s165, %s166
    %p168 = scmp.eq.s32.totalorder %s167, 0
    %s170 = sadd.s32 %s169, 1
    %s171 = scalar_select %p168, %s169, %s170
    %p174 = pneg %p168
    %p175 = scmp.eq.s32.totalorder %s12, 3
    %p176 = por %p174, %p175
    %p177 = scmp.ne.s32.totalorder %s169, %s172
    %p178 = scmp.eq.s32.totalorder %s12, 0
    %p179 = por %p177, %p178
    %p180 = scmp.ne.s32.totalorder %s169, %s172
    %p181 = scmp.eq.s32.totalorder %s17, 3
    %p182 = por %p180, %p181
    %p183 = scmp.ne.s32.totalorder %s172, %s173
    %p184 = scmp.eq.s32.totalorder %s17, 0
    %p185 = por %p183, %p184
    %p186 = scmp.ne.s32.totalorder %s172, %s173
    %p187 = scmp.eq.s32.totalorder %s18, 3
    %p188 = por %p186, %p187
    %p190 = scmp.ne.s32.totalorder %s173, %s189
    %p191 = scmp.eq.s32.totalorder %s18, 0
    %p192 = por %p190, %p191
    %p193 = scmp.le.s32.totalorder 1, %s12
    %p194 = scmp.lt.s32.totalorder %s12, 5
    %p195 = pnand %p193, %p194
    %p196 = pneg %p195
    // Predicated region
    $region9: #{_lambda_.1} parent=5 // pred_check
      _
    $region10: #{_lambda_.1} parent=5 // pred_check_branch
      %198 = sbr.rel (%p195) target = $region12
    $region11: #{_lambda_.1} parent=5 // pred_region
      %s199 = ssub.s32 %s12, 1
      // Predicated region
      $region13: #{_lambda_.1} parent=11 // pred_check
        %p200 = pneg %p73
      $region14: #{_lambda_.1} parent=11 // pred_check_branch
        %202 = sbr.rel (%p200) target = $region16
      $region15: #{_lambda_.1} parent=11 // pred_region
        _
      $region16: #{_lambda_.1} parent=11 // pred_fallthru
        _
      // Predicated region
      $region17: #{_lambda_.1} parent=11 // pred_check
        %p203 = pneg %p94
      $region18: #{_lambda_.1} parent=11 // pred_check_branch
        %205 = sbr.rel (%p203) target = $region20
      $region19: #{_lambda_.1} parent=11 // pred_region
        _
      $region20: #{_lambda_.1} parent=11 // pred_fallthru
        _
      // Predicated region
      $region21: #{_lambda_.1} parent=11 // pred_check
        %p206 = pneg %p115
      $region22: #{_lambda_.1} parent=11 // pred_check_branch
        %208 = sbr.rel (%p206) target = $region24
      $region23: #{_lambda_.1} parent=11 // pred_region
        _
      $region24: #{_lambda_.1} parent=11 // pred_fallthru
        _
      // Predicated region
      $region25: #{_lambda_.1} parent=11 // pred_check
        %p209 = pneg %p136
      $region26: #{_lambda_.1} parent=11 // pred_check_branch
        %211 = sbr.rel (%p209) target = $region28
      $region27: #{_lambda_.1} parent=11 // pred_region
        _
      $region28: #{_lambda_.1} parent=11 // pred_fallthru
        _
      // Predicated region
      $region29: #{_lambda_.1} parent=11 // pred_check
        %p212 = pneg %p157
      $region30: #{_lambda_.1} parent=11 // pred_check_branch
        %214 = sbr.rel (%p212) target = $region32
      $region31: #{_lambda_.1} parent=11 // pred_region
        _
      $region32: #{_lambda_.1} parent=11 // pred_fallthru
        _
    $region12: #{_lambda_.1} parent=5 // pred_fallthru
      _
    %p215 = scmp.lt.s32.totalorder %s12, 4
    // Predicated region
    $region33: #{_lambda_.1} parent=5 // pred_check
      %p216 = pneg %p215
    $region34: #{_lambda_.1} parent=5 // pred_check_branch
      %218 = sbr.rel (%p216) target = $region36
    $region35: #{_lambda_.1} parent=5 // pred_region
      // Predicated region
      $region37: #{_lambda_.1} parent=35 // pred_check
        %p219 = pneg %p46
      $region38: #{_lambda_.1} parent=35 // pred_check_branch
        %221 = sbr.rel (%p219) target = $region40
      $region39: #{_lambda_.1} parent=35 // pred_region
        %s222 = smul.u32 8, %s20
        %p223 = scmp.lt.s32.totalorder %s19, 1
        %s224 = scalar_select %p223, %s19, 1
        %p225 = scmp.lt.s32.totalorder %s222, 15
        %s226 = scalar_select %p225, %s222, 15
        %s227 = smul.addr %s226, 2
        %s228 = smul.addr %s224, 32
        %s229 = sadd.s32 %s227, %s228
        %s230 = smul.addr %s229, 8
        %s231 = scalar_lea.vmem %s0, %s230
        %s232 = smul.u32 8, %s20
      $region40: #{_lambda_.1} parent=35 // pred_fallthru
        _
    $region36: #{_lambda_.1} parent=5 // pred_fallthru
      _
    %p233 = scmp.le.s32.totalorder 1, %s12
    %p234 = scmp.lt.s32.totalorder %s12, 5
    %p235 = pnand %p233, %p234
    %p236 = pneg %p235
    // Predicated region
    $region41: #{_lambda_.1} parent=5 // pred_check
      _
    $region42: #{_lambda_.1} parent=5 // pred_check_branch
      %238 = sbr.rel (%p235) target = $region44
    $region43: #{_lambda_.1} parent=5 // pred_region
      %s239 = ssub.s32 %s12, 1
      %s240 = smul.u32 8, %s22
      %p241 = scmp.lt.s32.totalorder %s21, 1
      %s242 = scalar_select %p241, %s21, 1
      %p243 = scmp.lt.s32.totalorder %s240, 15
      %s244 = scalar_select %p243, %s240, 15
      %s245 = smul.addr %s244, 2
      %s246 = smul.addr %s242, 32
      %s247 = sadd.s32 %s245, %s246
      %s248 = smul.addr %s247, 8
      %s249 = scalar_lea.vmem %s0, %s248
      %p250 = pneg %p52
      %p251 = pneg %p49
      %p252 = pneg %p73
      %p253 = pneg %p70
      %p254 = pneg %p94
      %p255 = pneg %p91
      %p256 = pneg %p115
      %p257 = pneg %p112
      %p258 = pneg %p136
      %p259 = pneg %p133
      %p260 = pneg %p157
      %p261 = pneg %p154
      %p262 = pneg %p185
      %p263 = pneg %p182
      %s264 = smul.u32 8, %s22
      %p265 = scmp.lt.s32.totalorder %s21, 1
      %s266 = scalar_select %p265, %s21, 1
      %p267 = scmp.lt.s32.totalorder %s264, 15
      %s268 = scalar_select %p267, %s264, 15
      %s269 = smul.addr %s268, 2
      %s270 = smul.addr %s266, 32
      %s271 = sadd.s32 %s269, %s270
      %s272 = smul.addr %s271, 8
      %s273 = scalar_lea.vmem %s6, %s272
      %s274 = smul.u32 8, %s22
      %p275 = scmp.lt.s32.totalorder %s21, 1
      %s276 = scalar_select %p275, %s21, 1
      %p277 = scmp.lt.s32.totalorder %s274, 15
      %s278 = scalar_select %p277, %s274, 15
      %s279 = smul.addr %s278, 2
      %s280 = smul.addr %s276, 32
      %s281 = sadd.s32 %s279, %s280
      %s282 = smul.addr %s281, 8
      %s283 = scalar_lea.vmem %s0, %s282
      %s284 = smul.u32 8, %s22
      %s285 = smul.u32 8, %s22
      %p286 = scmp.lt.s32.totalorder %s21, 1
      %s287 = scalar_select %p286, %s21, 1
      %p288 = scmp.lt.s32.totalorder %s285, 15
      %s289 = scalar_select %p288, %s285, 15
      %s290 = smul.addr %s289, 2
      %s291 = smul.addr %s287, 32
      %s292 = sadd.s32 %s290, %s291
      %s293 = smul.addr %s292, 8
      %s294 = scalar_lea.vmem %s6, %s293
      %s295 = smul.u32 8, %s22
      %v297 = vld [vmem:[%s283] sm:$0xff]
      %v298 = vld [vmem:[%s283 + $0x8] sm:$0xff]
      %v299 = vld [vmem:[%s283 + $0x10] sm:$0xff]
      %v300 = vld [vmem:[%s283 + $0x18] sm:$0xff]
      %v301 = vld [vmem:[%s283 + $0x20] sm:$0xff]
      %v302 = vld [vmem:[%s283 + $0x28] sm:$0xff]
      %v303 = vld [vmem:[%s283 + $0x30] sm:$0xff]
      %v304 = vld [vmem:[%s283 + $0x38] sm:$0xff]
      %v305 = vld [vmem:[%s283 + $0x40] sm:$0xff]
      %v306 = vld [vmem:[%s283 + $0x48] sm:$0xff]
      %v307 = vld [vmem:[%s283 + $0x50] sm:$0xff]
      %v308 = vld [vmem:[%s283 + $0x58] sm:$0xff]
      %v309 = vld [vmem:[%s283 + $0x60] sm:$0xff]
      %v310 = vld [vmem:[%s283 + $0x68] sm:$0xff]
      %v311 = vld [vmem:[%s283 + $0x70] sm:$0xff]
      %v312 = vld [vmem:[%s283 + $0x78] sm:$0xff]
      %v313 = vpack.c.bf16 %v298, %v297
      %v314 = vpack.c.bf16 %v300, %v299
      %v315 = vpack.c.bf16 %v302, %v301
      %v316 = vpack.c.bf16 %v304, %v303
      %v317 = vpack.c.bf16 %v306, %v305
      %v318 = vpack.c.bf16 %v308, %v307
      %v319 = vpack.c.bf16 %v310, %v309
      %v320 = vpack.c.bf16 %v312, %v311
      %v321 = vld [vmem:[%s1] sm:$0xf]
      %v322 = vld [vmem:[%s1 + $0x4] sm:$0xf]
      %v323 = vld [vmem:[%s2] sm:$0x1]
      %v325 = vlaneseq
      %v326 = vshrl.u32 %v325, 7
      %v327 = vsub.s32 0, %v326
      %v328 = vrot.slane %v323, %v327
      %v332 = vunpack.c.l.b16 %v321
      %v333 = vunpack.c.l.b16 %v322
      %v334 = vpack.c.b16 %v333, %v332
      %vm336 = vcmask 130048
      %v338 = vsel %vm336, %v313, 0
      %v341 = vsel %vm336, %v314, 0
      %v344 = vsel %vm336, %v315, 0
      %v347 = vsel %vm336, %v316, 0
      %v350 = vsel %vm336, %v317, 0
      %v353 = vsel %vm336, %v318, 0
      %v356 = vsel %vm336, %v319, 0
      %v359 = vsel %vm336, %v320, 0
      %361 = vmatprep.subr.bf16.mxu0 0
      %362 = vmatpush1.bf16.msra.mxu0 %v334
      %363 = vmatprep.subr.bf16.mxu0 0
      %364 = vmatpush1.bf16.msra.mxu0 0
      %365 = vmatprep.subr.bf16.mxu0 0
      %366 = vmatpush1.bf16.msra.mxu0 0
      %367 = vmatprep.subr.bf16.mxu0 0
      %368 = vmatpush1.bf16.msra.mxu0 0
      %369 = vmatprep.subr.bf16.mxu0 0
      %370 = vmatpush1.bf16.msra.mxu0 0
      %371 = vmatprep.subr.bf16.mxu0 0
      %372 = vmatpush1.bf16.msra.mxu0 0
      %373 = vmatprep.subr.bf16.mxu0 0
      %374 = vmatpush1.bf16.msra.mxu0 0
      %375 = vmatprep.subr.bf16.mxu0 0
      %376 = vmatpush1.bf16.msra.mxu0 0
      %377 = vmatprep.subr.bf16.mxu0 0
      %378 = vmatpush1.bf16.msra.mxu0 0
      %379 = vmatprep.subr.bf16.mxu0 0
      %380 = vmatpush1.bf16.msra.mxu0 0
      %381 = vmatprep.subr.bf16.mxu0 0
      %382 = vmatpush1.bf16.msra.mxu0 0
      %383 = vmatprep.subr.bf16.mxu0 0
      %384 = vmatpush1.bf16.msra.mxu0 0
      %385 = vmatprep.subr.bf16.mxu0 0
      %386 = vmatpush1.bf16.msra.mxu0 0
      %387 = vmatprep.subr.bf16.mxu0 0
      %388 = vmatpush1.bf16.msra.mxu0 0
      %389 = vmatprep.subr.bf16.mxu0 0
      %390 = vmatpush1.bf16.msra.mxu0 0
      %391 = vmatprep.subr.bf16.mxu0 0
      %392 = vmatpush1.bf16.msra.mxu0 0
      %393 = vmatprep.mubr.bf16.mxu0 0
      %394 = vmatmul.mubr.bf16.gmra.mrb[0].mxu0 %v338
      %v395 = vpop.f32.mrb[0].mxu0
      %v396 = vadd.f32 %v328, %v395
      %v397 = vpop.f32.mrb[0].mxu0
      %v398 = vpop.f32.mrb[0].mxu0
      %v399 = vadd.f32 %v328, %v398
      %v400 = vpop.f32.mrb[0].mxu0
      %401 = vmatprep.mubr.bf16.mxu0 0
      %402 = vmatmul.mubr.bf16.gmra.mrb[0].mxu0 %v341
      %v403 = vpop.f32.mrb[0].mxu0
      %v404 = vadd.f32 %v328, %v403
      %v405 = vpop.f32.mrb[0].mxu0
      %v406 = vpop.f32.mrb[0].mxu0
      %v407 = vadd.f32 %v328, %v406
      %v408 = vpop.f32.mrb[0].mxu0
      %409 = vmatprep.mubr.bf16.mxu0 0
      %410 = vmatmul.mubr.bf16.gmra.mrb[0].mxu0 %v344
      %v411 = vpop.f32.mrb[0].mxu0
      %v412 = vadd.f32 %v328, %v411
      %v413 = vpop.f32.mrb[0].mxu0
      %v414 = vpop.f32.mrb[0].mxu0
      %v415 = vadd.f32 %v328, %v414
      %v416 = vpop.f32.mrb[0].mxu0
      %417 = vmatprep.mubr.bf16.mxu0 0
      %418 = vmatmul.mubr.bf16.gmra.mrb[0].mxu0 %v347
      %v419 = vpop.f32.mrb[0].mxu0
      %v420 = vadd.f32 %v328, %v419
      %v421 = vpop.f32.mrb[0].mxu0
      %v422 = vpop.f32.mrb[0].mxu0
      %v423 = vadd.f32 %v328, %v422
      %v424 = vpop.f32.mrb[0].mxu0
      %425 = vmatprep.mubr.bf16.mxu0 0
      %426 = vmatmul.mubr.bf16.gmra.mrb[0].mxu0 %v350
      %v427 = vpop.f32.mrb[0].mxu0
      %v428 = vadd.f32 %v328, %v427
      %v429 = vpop.f32.mrb[0].mxu0
      %v430 = vpop.f32.mrb[0].mxu0
      %v431 = vadd.f32 %v328, %v430
      %v432 = vpop.f32.mrb[0].mxu0
      %433 = vmatprep.mubr.bf16.mxu0 0
      %434 = vmatmul.mubr.bf16.gmra.mrb[0].mxu0 %v353
      %v435 = vpop.f32.mrb[0].mxu0
      %v436 = vadd.f32 %v328, %v435
      %v437 = vpop.f32.mrb[0].mxu0
      %v438 = vpop.f32.mrb[0].mxu0
      %v439 = vadd.f32 %v328, %v438
      %v440 = vpop.f32.mrb[0].mxu0
      %441 = vmatprep.mubr.bf16.mxu0 0
      %442 = vmatmul.mubr.bf16.gmra.mrb[0].mxu0 %v356
      %v443 = vpop.f32.mrb[0].mxu0
      %v444 = vadd.f32 %v328, %v443
      %v445 = vpop.f32.mrb[0].mxu0
      %v446 = vpop.f32.mrb[0].mxu0
      %v447 = vadd.f32 %v328, %v446
      %v448 = vpop.f32.mrb[0].mxu0
      %449 = vmatprep.mubr.bf16.mxu0 0
      %450 = vmatmul.mubr.bf16.gmra.mrb[0].mxu0 %v359
      %v451 = vpop.f32.mrb[0].mxu0
      %v452 = vadd.f32 %v328, %v451
      %v453 = vpop.f32.mrb[0].mxu0
      %v454 = vpop.f32.mrb[0].mxu0
      %v455 = vadd.f32 %v328, %v454
      %v456 = vpop.f32.mrb[0].mxu0
      %457 = vdwg.mxu0
      %v458 = vmul.f32 %v396, 0.35355338
      %v459 = vmul.f32 %v404, 0.35355338
      %v460 = vmul.f32 %v412, 0.35355338
      %v461 = vmul.f32 %v420, 0.35355338
      %v462 = vmul.f32 %v428, 0.35355338
      %v463 = vmul.f32 %v436, 0.35355338
      %v464 = vmul.f32 %v444, 0.35355338
      %v465 = vmul.f32 %v452, 0.35355338
      %v466 = vmul.f32 %v399, 0.35355338
      %v467 = vmul.f32 %v407, 0.35355338
      %v468 = vmul.f32 %v415, 0.35355338
      %v469 = vmul.f32 %v423, 0.35355338
      %v470 = vmul.f32 %v431, 0.35355338
      %v471 = vmul.f32 %v439, 0.35355338
      %v472 = vmul.f32 %v447, 0.35355338
      %v473 = vmul.f32 %v455, 0.35355338
      %v474 = vpack.c.bf16 %v459, %v458
      %v475 = vpack.c.bf16 %v461, %v460
      %v476 = vpack.c.bf16 %v463, %v462
      %v477 = vpack.c.bf16 %v465, %v464
      %v478 = vpack.c.bf16 %v467, %v466
      %v479 = vpack.c.bf16 %v469, %v468
      %v480 = vpack.c.bf16 %v471, %v470
      %v481 = vpack.c.bf16 %v473, %v472
      %v482 = vpack.c.bf16 %v404, %v396
      %v483 = vpack.c.bf16 %v420, %v412
      %v484 = vpack.c.bf16 %v436, %v428
      %v485 = vpack.c.bf16 %v452, %v444
      %v486 = vpack.c.bf16 %v407, %v399
      %v487 = vpack.c.bf16 %v423, %v415
      %v488 = vpack.c.bf16 %v439, %v431
      %v489 = vpack.c.bf16 %v455, %v447
      %v490 = vld [vmem:[%s3] sm:$0xff]
      %v491 = vld [vmem:[%s3 + $0x8] sm:$0xff]
      %v492 = vld [vmem:[%s3 + $0x10] sm:$0xff]
      %v493 = vld [vmem:[%s3 + $0x18] sm:$0xff]
      %v494 = vld [vmem:[%s3 + $0x20] sm:$0xff]
      %v495 = vld [vmem:[%s3 + $0x28] sm:$0xff]
      %v496 = vld [vmem:[%s3 + $0x30] sm:$0xff]
      %v497 = vld [vmem:[%s3 + $0x38] sm:$0xff]
      %502 = vrot.lane.b32.xlu0 %v482, 112
      %v503 = vpop.permute.xlu0 %502
      %504 = vrot.lane.b32.xlu0 %v483, 112
      %v505 = vpop.permute.xlu0 %504
      %506 = vrot.lane.b32.xlu0 %v484, 112
      %v507 = vpop.permute.xlu0 %506
      %508 = vrot.lane.b32.xlu0 %v485, 112
      %v509 = vpop.permute.xlu0 %508
      %vm510 = vcmask 64512
      %v512 = vsel %vm510, %v474, 0
      %v515 = vsel %vm510, %v475, 0
      %v518 = vsel %vm510, %v476, 0
      %v521 = vsel %vm510, %v477, 0
      %v524 = vsel %vm510, %v503, 0
      %v527 = vsel %vm510, %v505, 0
      %v530 = vsel %vm510, %v507, 0
      %v533 = vsel %vm510, %v509, 0
      %535 = vmatprep.subr.bf16.mxu0 0
      %536 = vmatpush1.bf16.xpose.msra.mxu0 %v524
      %537 = vmatprep.subr.bf16.mxu0 0
      %538 = vmatpush1.bf16.xpose.msra.mxu0 %v527
      %539 = vmatprep.subr.bf16.mxu0 0
      %540 = vmatpush1.bf16.xpose.msra.mxu0 %v530
      %541 = vmatprep.subr.bf16.mxu0 0
      %542 = vmatpush1.bf16.xpose.msra.mxu0 %v533
      %543 = vmatprep.subr.bf16.mxu0 0
      %544 = vmatpush1.bf16.xpose.msra.mxu0 0
      %545 = vmatprep.subr.bf16.mxu0 0
      %546 = vmatpush1.bf16.xpose.msra.mxu0 0
      %547 = vmatprep.subr.bf16.mxu0 0
      %548 = vmatpush1.bf16.xpose.msra.mxu0 0
      %549 = vmatprep.subr.bf16.mxu0 0
      %550 = vmatpush1.bf16.xpose.msra.mxu0 0
      %551 = vmatprep.subr.bf16.mxu0 0
      %552 = vmatpush1.bf16.xpose.msra.mxu0 0
      %553 = vmatprep.subr.bf16.mxu0 0
      %554 = vmatpush1.bf16.xpose.msra.mxu0 0
      %555 = vmatprep.subr.bf16.mxu0 0
      %556 = vmatpush1.bf16.xpose.msra.mxu0 0
      %557 = vmatprep.subr.bf16.mxu0 0
      %558 = vmatpush1.bf16.xpose.msra.mxu0 0
      %559 = vmatprep.subr.bf16.mxu0 0
      %560 = vmatpush1.bf16.xpose.msra.mxu0 0
      %561 = vmatprep.subr.bf16.mxu0 0
      %562 = vmatpush1.bf16.xpose.msra.mxu0 0
      %563 = vmatprep.subr.bf16.mxu0 0
      %564 = vmatpush1.bf16.xpose.msra.mxu0 0
      %565 = vmatprep.subr.bf16.mxu0 0
      %566 = vmatpush1.bf16.xpose.msra.mxu0 0
      %567 = vmatprep.mubr.bf16.mxu0 0
      %568 = vmatmul.mubr.bf16.gmra.mrb[0].mxu0 %v512
      %v569 = vpop.f32.mrb[0].mxu0
      %v570 = vadd.f32 %v490, %v569
      %v571 = vpop.f32.mrb[0].mxu0
      %v572 = vpop.f32.mrb[0].mxu0
      %v573 = vadd.f32 %v491, %v572
      %v574 = vpop.f32.mrb[0].mxu0
      %575 = vmatprep.mubr.bf16.mxu0 0
      %576 = vmatmul.mubr.bf16.gmra.mrb[0].mxu0 %v515
      %v577 = vpop.f32.mrb[0].mxu0
      %v578 = vadd.f32 %v492, %v577
      %v579 = vpop.f32.mrb[0].mxu0
      %v580 = vpop.f32.mrb[0].mxu0
      %v581 = vadd.f32 %v493, %v580
      %v582 = vpop.f32.mrb[0].mxu0
      %583 = vmatprep.mubr.bf16.mxu0 0
      %584 = vmatmul.mubr.bf16.gmra.mrb[0].mxu0 %v518
      %v585 = vpop.f32.mrb[0].mxu0
      %v586 = vadd.f32 %v494, %v585
      %v587 = vpop.f32.mrb[0].mxu0
      %v588 = vpop.f32.mrb[0].mxu0
      %v589 = vadd.f32 %v495, %v588
      %v590 = vpop.f32.mrb[0].mxu0
      %591 = vmatprep.mubr.bf16.mxu0 0
      %592 = vmatmul.mubr.bf16.gmra.mrb[0].mxu0 %v521
      %v593 = vpop.f32.mrb[0].mxu0
      %v594 = vadd.f32 %v496, %v593
      %v595 = vpop.f32.mrb[0].mxu0
      %v596 = vpop.f32.mrb[0].mxu0
      %v597 = vadd.f32 %v497, %v596
      %v598 = vpop.f32.mrb[0].mxu0
      %599 = vdwg.mxu0
      %604 = vrot.lane.b32.xlu0 %v486, 112
      %v605 = vpop.permute.xlu0 %604
      %606 = vrot.lane.b32.xlu0 %v487, 112
      %v607 = vpop.permute.xlu0 %606
      %608 = vrot.lane.b32.xlu0 %v488, 112
      %v609 = vpop.permute.xlu0 %608
      %610 = vrot.lane.b32.xlu0 %v489, 112
      %v611 = vpop.permute.xlu0 %610
      %v613 = vsel %vm510, %v478, 0
      %v616 = vsel %vm510, %v479, 0
      %v619 = vsel %vm510, %v480, 0
      %v622 = vsel %vm510, %v481, 0
      %v625 = vsel %vm510, %v605, 0
      %v628 = vsel %vm510, %v607, 0
      %v631 = vsel %vm510, %v609, 0
      %v634 = vsel %vm510, %v611, 0
      %636 = vmatprep.subr.bf16.mxu0 0
      %637 = vmatpush1.bf16.xpose.msra.mxu0 %v625
      %638 = vmatprep.subr.bf16.mxu0 0
      %639 = vmatpush1.bf16.xpose.msra.mxu0 %v628
      %640 = vmatprep.subr.bf16.mxu0 0
      %641 = vmatpush1.bf16.xpose.msra.mxu0 %v631
      %642 = vmatprep.subr.bf16.mxu0 0
      %643 = vmatpush1.bf16.xpose.msra.mxu0 %v634
      %644 = vmatprep.subr.bf16.mxu0 0
      %645 = vmatpush1.bf16.xpose.msra.mxu0 0
      %646 = vmatprep.subr.bf16.mxu0 0
      %647 = vmatpush1.bf16.xpose.msra.mxu0 0
      %648 = vmatprep.subr.bf16.mxu0 0
      %649 = vmatpush1.bf16.xpose.msra.mxu0 0
      %650 = vmatprep.subr.bf16.mxu0 0
      %651 = vmatpush1.bf16.xpose.msra.mxu0 0
      %652 = vmatprep.subr.bf16.mxu0 0
      %653 = vmatpush1.bf16.xpose.msra.mxu0 0
      %654 = vmatprep.subr.bf16.mxu0 0
      %655 = vmatpush1.bf16.xpose.msra.mxu0 0
      %656 = vmatprep.subr.bf16.mxu0 0
      %657 = vmatpush1.bf16.xpose.msra.mxu0 0
      %658 = vmatprep.subr.bf16.mxu0 0
      %659 = vmatpush1.bf16.xpose.msra.mxu0 0
      %660 = vmatprep.subr.bf16.mxu0 0
      %661 = vmatpush1.bf16.xpose.msra.mxu0 0
      %662 = vmatprep.subr.bf16.mxu0 0
      %663 = vmatpush1.bf16.xpose.msra.mxu0 0
      %664 = vmatprep.subr.bf16.mxu0 0
      %665 = vmatpush1.bf16.xpose.msra.mxu0 0
      %666 = vmatprep.subr.bf16.mxu0 0
      %667 = vmatpush1.bf16.xpose.msra.mxu0 0
      %668 = vmatprep.mubr.bf16.mxu0 0
      %669 = vmatmul.mubr.bf16.gmra.mrb[0].mxu0 %v613
      %v670 = vpop.f32.mrb[0].mxu0
      %v671 = vadd.f32 %v490, %v670
      %v672 = vpop.f32.mrb[0].mxu0
      %v673 = vpop.f32.mrb[0].mxu0
      %v674 = vadd.f32 %v491, %v673
      %v675 = vpop.f32.mrb[0].mxu0
      %676 = vmatprep.mubr.bf16.mxu0 0
      %677 = vmatmul.mubr.bf16.gmra.mrb[0].mxu0 %v616
      %v678 = vpop.f32.mrb[0].mxu0
      %v679 = vadd.f32 %v492, %v678
      %v680 = vpop.f32.mrb[0].mxu0
      %v681 = vpop.f32.mrb[0].mxu0
      %v682 = vadd.f32 %v493, %v681
      %v683 = vpop.f32.mrb[0].mxu0
      %684 = vmatprep.mubr.bf16.mxu0 0
      %685 = vmatmul.mubr.bf16.gmra.mrb[0].mxu0 %v619
      %v686 = vpop.f32.mrb[0].mxu0
      %v687 = vadd.f32 %v494, %v686
      %v688 = vpop.f32.mrb[0].mxu0
      %v689 = vpop.f32.mrb[0].mxu0
      %v690 = vadd.f32 %v495, %v689
      %v691 = vpop.f32.mrb[0].mxu0
      %692 = vmatprep.mubr.bf16.mxu0 0
      %693 = vmatmul.mubr.bf16.gmra.mrb[0].mxu0 %v622
      %v694 = vpop.f32.mrb[0].mxu0
      %v695 = vadd.f32 %v496, %v694
      %v696 = vpop.f32.mrb[0].mxu0
      %v697 = vpop.f32.mrb[0].mxu0
      %v698 = vadd.f32 %v497, %v697
      %v699 = vpop.f32.mrb[0].mxu0
      %700 = vdwg.mxu0
      %vm701 = vcmask 523264
      %v702 = vsel %vm701, %v570, -inf
      %703 = vmax.xlane.f32.xlu0 %v702
      %v704 = vpop.xlane.xlu0 %703
      %v705 = vsel %vm701, %v573, -inf
      %706 = vmax.xlane.f32.xlu0 %v705
      %v707 = vpop.xlane.xlu0 %706
      %v708 = vsel %vm701, %v578, -inf
      %709 = vmax.xlane.f32.xlu0 %v708
      %v710 = vpop.xlane.xlu0 %709
      %v711 = vsel %vm701, %v581, -inf
      %712 = vmax.xlane.f32.xlu0 %v711
      %v713 = vpop.xlane.xlu0 %712
      %v714 = vsel %vm701, %v586, -inf
      %715 = vmax.xlane.f32.xlu0 %v714
      %v716 = vpop.xlane.xlu0 %715
      %v717 = vsel %vm701, %v589, -inf
      %718 = vmax.xlane.f32.xlu0 %v717
      %v719 = vpop.xlane.xlu0 %718
      %v720 = vsel %vm701, %v594, -inf
      %721 = vmax.xlane.f32.xlu0 %v720
      %v722 = vpop.xlane.xlu0 %721
      %v723 = vsel %vm701, %v597, -inf
      %724 = vmax.xlane.f32.xlu0 %v723
      %v725 = vpop.xlane.xlu0 %724
      %v726 = vsel %vm701, %v671, -inf
      %727 = vmax.xlane.f32.xlu0 %v726
      %v728 = vpop.xlane.xlu0 %727
      %v729 = vsel %vm701, %v674, -inf
      %730 = vmax.xlane.f32.xlu0 %v729
      %v731 = vpop.xlane.xlu0 %730
      %v732 = vsel %vm701, %v679, -inf
      %733 = vmax.xlane.f32.xlu0 %v732
      %v734 = vpop.xlane.xlu0 %733
      %v735 = vsel %vm701, %v682, -inf
      %736 = vmax.xlane.f32.xlu0 %v735
      %v737 = vpop.xlane.xlu0 %736
      %v738 = vsel %vm701, %v687, -inf
      %739 = vmax.xlane.f32.xlu0 %v738
      %v740 = vpop.xlane.xlu0 %739
      %v741 = vsel %vm701, %v690, -inf
      %742 = vmax.xlane.f32.xlu0 %v741
      %v743 = vpop.xlane.xlu0 %742
      %v744 = vsel %vm701, %v695, -inf
      %745 = vmax.xlane.f32.xlu0 %v744
      %v746 = vpop.xlane.xlu0 %745
      %v747 = vsel %vm701, %v698, -inf
      %748 = vmax.xlane.f32.xlu0 %v747
      %v749 = vpop.xlane.xlu0 %748
      %v750 = vsub.f32 %v570, %v704
      %v751 = vsub.f32 %v573, %v707
      %v752 = vsub.f32 %v578, %v710
      %v753 = vsub.f32 %v581, %v713
      %v754 = vsub.f32 %v586, %v716
      %v755 = vsub.f32 %v589, %v719
      %v756 = vsub.f32 %v594, %v722
      %v757 = vsub.f32 %v597, %v725
      %v758 = vsub.f32 %v671, %v728
      %v759 = vsub.f32 %v674, %v731
      %v760 = vsub.f32 %v679, %v734
      %v761 = vsub.f32 %v682, %v737
      %v762 = vsub.f32 %v687, %v740
      %v763 = vsub.f32 %v690, %v743
      %v764 = vsub.f32 %v695, %v746
      %v765 = vsub.f32 %v698, %v749
      %v766 = vmul.f32 %v750, 1.442695
      %v767 = vpow.pop %v766
      %v768 = vmul.f32 %v751, 1.442695
      %v769 = vpow.pop %v768
      %v770 = vmul.f32 %v752, 1.442695
      %v771 = vpow.pop %v770
      %v772 = vmul.f32 %v753, 1.442695
      %v773 = vpow.pop %v772
      %v774 = vmul.f32 %v754, 1.442695
      %v775 = vpow.pop %v774
      %v776 = vmul.f32 %v755, 1.442695
      %v777 = vpow.pop %v776
      %v778 = vmul.f32 %v756, 1.442695
      %v779 = vpow.pop %v778
      %v780 = vmul.f32 %v757, 1.442695
      %v781 = vpow.pop %v780
      %v782 = vmul.f32 %v758, 1.442695
      %v783 = vpow.pop %v782
      %v784 = vmul.f32 %v759, 1.442695
      %v785 = vpow.pop %v784
      %v786 = vmul.f32 %v760, 1.442695
      %v787 = vpow.pop %v786
      %v788 = vmul.f32 %v761, 1.442695
      %v789 = vpow.pop %v788
      %v790 = vmul.f32 %v762, 1.442695
      %v791 = vpow.pop %v790
      %v792 = vmul.f32 %v763, 1.442695
      %v793 = vpow.pop %v792
      %v794 = vmul.f32 %v764, 1.442695
      %v795 = vpow.pop %v794
      %v796 = vmul.f32 %v765, 1.442695
      %v797 = vpow.pop %v796
      %v798 = vsel %vm701, %v767, 0.0
      %799 = vadd.xlane.f32.xlu0 %v798
      %v800 = vpop.xlane.xlu0 %799
      %v801 = vsel %vm701, %v769, 0.0
      %802 = vadd.xlane.f32.xlu0 %v801
      %v803 = vpop.xlane.xlu0 %802
      %v804 = vsel %vm701, %v771, 0.0
      %805 = vadd.xlane.f32.xlu0 %v804
      %v806 = vpop.xlane.xlu0 %805
      %v807 = vsel %vm701, %v773, 0.0
      %808 = vadd.xlane.f32.xlu0 %v807
      %v809 = vpop.xlane.xlu0 %808
      %v810 = vsel %vm701, %v775, 0.0
      %811 = vadd.xlane.f32.xlu0 %v810
      %v812 = vpop.xlane.xlu0 %811
      %v813 = vsel %vm701, %v777, 0.0
      %814 = vadd.xlane.f32.xlu0 %v813
      %v815 = vpop.xlane.xlu0 %814
      %v816 = vsel %vm701, %v779, 0.0
      %817 = vadd.xlane.f32.xlu0 %v816
      %v818 = vpop.xlane.xlu0 %817
      %v819 = vsel %vm701, %v781, 0.0
      %820 = vadd.xlane.f32.xlu0 %v819
      %v821 = vpop.xlane.xlu0 %820
      %v822 = vsel %vm701, %v783, 0.0
      %823 = vadd.xlane.f32.xlu0 %v822
      %v824 = vpop.xlane.xlu0 %823
      %v825 = vsel %vm701, %v785, 0.0
      %826 = vadd.xlane.f32.xlu0 %v825
      %v827 = vpop.xlane.xlu0 %826
      %v828 = vsel %vm701, %v787, 0.0
      %829 = vadd.xlane.f32.xlu0 %v828
      %v830 = vpop.xlane.xlu0 %829
      %v831 = vsel %vm701, %v789, 0.0
      %832 = vadd.xlane.f32.xlu0 %v831
      %v833 = vpop.xlane.xlu0 %832
      %v834 = vsel %vm701, %v791, 0.0
      %835 = vadd.xlane.f32.xlu0 %v834
      %v836 = vpop.xlane.xlu0 %835
      %v837 = vsel %vm701, %v793, 0.0
      %838 = vadd.xlane.f32.xlu0 %v837
      %v839 = vpop.xlane.xlu0 %838
      %v840 = vsel %vm701, %v795, 0.0
      %841 = vadd.xlane.f32.xlu0 %v840
      %v842 = vpop.xlane.xlu0 %841
      %v843 = vsel %vm701, %v797, 0.0
      %844 = vadd.xlane.f32.xlu0 %v843
      %v845 = vpop.xlane.xlu0 %844
      %v846 = vpack.c.bf16 %v769, %v767
      %v847 = vpack.c.bf16 %v773, %v771
      %v848 = vpack.c.bf16 %v777, %v775
      %v849 = vpack.c.bf16 %v781, %v779
      %v850 = vpack.c.bf16 %v785, %v783
      %v851 = vpack.c.bf16 %v789, %v787
      %v852 = vpack.c.bf16 %v793, %v791
      %v853 = vpack.c.bf16 %v797, %v795
      %854 = vrot.lane.b32.xlu0 %v482, 96
      %v855 = vpop.permute.xlu0 %854
      %856 = vrot.lane.b32.xlu0 %v483, 96
      %v857 = vpop.permute.xlu0 %856
      %858 = vrot.lane.b32.xlu0 %v484, 96
      %v859 = vpop.permute.xlu0 %858
      %860 = vrot.lane.b32.xlu0 %v485, 96
      %v861 = vpop.permute.xlu0 %860
      %v867 = vsel %vm701, %v846, 0
      %v870 = vsel %vm701, %v847, 0
      %v873 = vsel %vm701, %v848, 0
      %v876 = vsel %vm701, %v849, 0
      %878 = vmatprep.subr.bf16.mxu0 0
      %879 = vmatpush1.bf16.msra.mxu0 %v855
      %880 = vmatprep.subr.bf16.mxu0 0
      %881 = vmatpush1.bf16.msra.mxu0 %v857
      %882 = vmatprep.subr.bf16.mxu0 0
      %883 = vmatpush1.bf16.msra.mxu0 %v859
      %884 = vmatprep.subr.bf16.mxu0 0
      %885 = vmatpush1.bf16.msra.mxu0 %v861
      %886 = vmatprep.subr.bf16.mxu0 0
      %887 = vmatpush1.bf16.msra.mxu0 0
      %888 = vmatprep.subr.bf16.mxu0 0
      %889 = vmatpush1.bf16.msra.mxu0 0
      %890 = vmatprep.subr.bf16.mxu0 0
      %891 = vmatpush1.bf16.msra.mxu0 0
      %892 = vmatprep.subr.bf16.mxu0 0
      %893 = vmatpush1.bf16.msra.mxu0 0
      %894 = vmatprep.subr.bf16.mxu0 0
      %895 = vmatpush1.bf16.msra.mxu0 0
      %896 = vmatprep.subr.bf16.mxu0 0
      %897 = vmatpush1.bf16.msra.mxu0 0
      %898 = vmatprep.subr.bf16.mxu0 0
      %899 = vmatpush1.bf16.msra.mxu0 0
      %900 = vmatprep.subr.bf16.mxu0 0
      %901 = vmatpush1.bf16.msra.mxu0 0
      %902 = vmatprep.subr.bf16.mxu0 0
      %903 = vmatpush1.bf16.msra.mxu0 0
      %904 = vmatprep.subr.bf16.mxu0 0
      %905 = vmatpush1.bf16.msra.mxu0 0
      %906 = vmatprep.subr.bf16.mxu0 0
      %907 = vmatpush1.bf16.msra.mxu0 0
      %908 = vmatprep.subr.bf16.mxu0 0
      %909 = vmatpush1.bf16.msra.mxu0 0
      %910 = vmatprep.mubr.bf16.mxu0 0
      %911 = vmatmul.mubr.bf16.gmra.mrb[0].mxu0 %v867
      %v912 = vpop.f32.mrb[0].mxu0
      %v913 = vadd.f32 0.0, %v912
      %v914 = vpop.f32.mrb[0].mxu0
      %v915 = vpop.f32.mrb[0].mxu0
      %v916 = vadd.f32 0.0, %v915
      %v917 = vpop.f32.mrb[0].mxu0
      %918 = vmatprep.mubr.bf16.mxu0 0
      %919 = vmatmul.mubr.bf16.gmra.mrb[0].mxu0 %v870
      %v920 = vpop.f32.mrb[0].mxu0
      %v921 = vadd.f32 0.0, %v920
      %v922 = vpop.f32.mrb[0].mxu0
      %v923 = vpop.f32.mrb[0].mxu0
      %v924 = vadd.f32 0.0, %v923
      %v925 = vpop.f32.mrb[0].mxu0
      %926 = vmatprep.mubr.bf16.mxu0 0
      %927 = vmatmul.mubr.bf16.gmra.mrb[0].mxu0 %v873
      %v928 = vpop.f32.mrb[0].mxu0
      %v929 = vadd.f32 0.0, %v928
      %v930 = vpop.f32.mrb[0].mxu0
      %v931 = vpop.f32.mrb[0].mxu0
      %v932 = vadd.f32 0.0, %v931
      %v933 = vpop.f32.mrb[0].mxu0
      %934 = vmatprep.mubr.bf16.mxu0 0
      %935 = vmatmul.mubr.bf16.gmra.mrb[0].mxu0 %v876
      %v936 = vpop.f32.mrb[0].mxu0
      %v937 = vadd.f32 0.0, %v936
      %v938 = vpop.f32.mrb[0].mxu0
      %v939 = vpop.f32.mrb[0].mxu0
      %v940 = vadd.f32 0.0, %v939
      %v941 = vpop.f32.mrb[0].mxu0
      %942 = vdwg.mxu0
      %943 = vrot.lane.b32.xlu0 %v486, 96
      %v944 = vpop.permute.xlu0 %943
      %945 = vrot.lane.b32.xlu0 %v487, 96
      %v946 = vpop.permute.xlu0 %945
      %947 = vrot.lane.b32.xlu0 %v488, 96
      %v948 = vpop.permute.xlu0 %947
      %949 = vrot.lane.b32.xlu0 %v489, 96
      %v950 = vpop.permute.xlu0 %949
      %v956 = vsel %vm701, %v850, 0
      %v959 = vsel %vm701, %v851, 0
      %v962 = vsel %vm701, %v852, 0
      %v965 = vsel %vm701, %v853, 0
      %967 = vmatprep.subr.bf16.mxu0 0
      %968 = vmatpush1.bf16.msra.mxu0 %v944
      %969 = vmatprep.subr.bf16.mxu0 0
      %970 = vmatpush1.bf16.msra.mxu0 %v946
      %971 = vmatprep.subr.bf16.mxu0 0
      %972 = vmatpush1.bf16.msra.mxu0 %v948
      %973 = vmatprep.subr.bf16.mxu0 0
      %974 = vmatpush1.bf16.msra.mxu0 %v950
      %975 = vmatprep.subr.bf16.mxu0 0
      %976 = vmatpush1.bf16.msra.mxu0 0
      %977 = vmatprep.subr.bf16.mxu0 0
      %978 = vmatpush1.bf16.msra.mxu0 0
      %979 = vmatprep.subr.bf16.mxu0 0
      %980 = vmatpush1.bf16.msra.mxu0 0
      %981 = vmatprep.subr.bf16.mxu0 0
      %982 = vmatpush1.bf16.msra.mxu0 0
      %983 = vmatprep.subr.bf16.mxu0 0
      %984 = vmatpush1.bf16.msra.mxu0 0
      %985 = vmatprep.subr.bf16.mxu0 0
      %986 = vmatpush1.bf16.msra.mxu0 0
      %987 = vmatprep.subr.bf16.mxu0 0
      %988 = vmatpush1.bf16.msra.mxu0 0
      %989 = vmatprep.subr.bf16.mxu0 0
      %990 = vmatpush1.bf16.msra.mxu0 0
      %991 = vmatprep.subr.bf16.mxu0 0
      %992 = vmatpush1.bf16.msra.mxu0 0
      %993 = vmatprep.subr.bf16.mxu0 0
      %994 = vmatpush1.bf16.msra.mxu0 0
      %995 = vmatprep.subr.bf16.mxu0 0
      %996 = vmatpush1.bf16.msra.mxu0 0
      %997 = vmatprep.subr.bf16.mxu0 0
      %998 = vmatpush1.bf16.msra.mxu0 0
      %999 = vmatprep.mubr.bf16.mxu0 0
      %1000 = vmatmul.mubr.bf16.gmra.mrb[0].mxu0 %v956
      %v1001 = vpop.f32.mrb[0].mxu0
      %v1002 = vadd.f32 0.0, %v1001
      %v1003 = vpop.f32.mrb[0].mxu0
      %v1004 = vpop.f32.mrb[0].mxu0
      %v1005 = vadd.f32 0.0, %v1004
      %v1006 = vpop.f32.mrb[0].mxu0
      %1007 = vmatprep.mubr.bf16.mxu0 0
      %1008 = vmatmul.mubr.bf16.gmra.mrb[0].mxu0 %v959
      %v1009 = vpop.f32.mrb[0].mxu0
      %v1010 = vadd.f32 0.0, %v1009
      %v1011 = vpop.f32.mrb[0].mxu0
      %v1012 = vpop.f32.mrb[0].mxu0
      %v1013 = vadd.f32 0.0, %v1012
      %v1014 = vpop.f32.mrb[0].mxu0
      %1015 = vmatprep.mubr.bf16.mxu0 0
      %1016 = vmatmul.mubr.bf16.gmra.mrb[0].mxu0 %v962
      %v1017 = vpop.f32.mrb[0].mxu0
      %v1018 = vadd.f32 0.0, %v1017
      %v1019 = vpop.f32.mrb[0].mxu0
      %v1020 = vpop.f32.mrb[0].mxu0
      %v1021 = vadd.f32 0.0, %v1020
      %v1022 = vpop.f32.mrb[0].mxu0
      %1023 = vmatprep.mubr.bf16.mxu0 0
      %1024 = vmatmul.mubr.bf16.gmra.mrb[0].mxu0 %v965
      %v1025 = vpop.f32.mrb[0].mxu0
      %v1026 = vadd.f32 0.0, %v1025
      %v1027 = vpop.f32.mrb[0].mxu0
      %v1028 = vpop.f32.mrb[0].mxu0
      %v1029 = vadd.f32 0.0, %v1028
      %v1030 = vpop.f32.mrb[0].mxu0
      %1031 = vdwg.mxu0
      %v1032 = vrcp.pop %v800
      %v1033 = vrcp.pop %v803
      %v1034 = vrcp.pop %v806
      %v1035 = vrcp.pop %v809
      %v1036 = vrcp.pop %v812
      %v1037 = vrcp.pop %v815
      %v1038 = vrcp.pop %v818
      %v1039 = vrcp.pop %v821
      %v1040 = vrcp.pop %v824
      %v1041 = vrcp.pop %v827
      %v1042 = vrcp.pop %v830
      %v1043 = vrcp.pop %v833
      %v1044 = vrcp.pop %v836
      %v1045 = vrcp.pop %v839
      %v1046 = vrcp.pop %v842
      %v1047 = vrcp.pop %v845
      %v1048 = vmul.f32 %v913, %v1032
      %v1049 = vmul.f32 %v916, %v1033
      %v1050 = vmul.f32 %v921, %v1034
      %v1051 = vmul.f32 %v924, %v1035
      %v1052 = vmul.f32 %v929, %v1036
      %v1053 = vmul.f32 %v932, %v1037
      %v1054 = vmul.f32 %v937, %v1038
      %v1055 = vmul.f32 %v940, %v1039
      %v1056 = vmul.f32 %v1002, %v1040
      %v1057 = vmul.f32 %v1005, %v1041
      %v1058 = vmul.f32 %v1010, %v1042
      %v1059 = vmul.f32 %v1013, %v1043
      %v1060 = vmul.f32 %v1018, %v1044
      %v1061 = vmul.f32 %v1021, %v1045
      %v1062 = vmul.f32 %v1026, %v1046
      %v1063 = vmul.f32 %v1029, %v1047
      %s1064 = scalar_lea.vmem %s3, 64
      %v1065 = vld [vmem:[%s1064] sm:$0xff]
      %v1066 = vld [vmem:[%s1064 + $0x8] sm:$0xff]
      %v1067 = vld [vmem:[%s1064 + $0x10] sm:$0xff]
      %v1068 = vld [vmem:[%s1064 + $0x18] sm:$0xff]
      %v1069 = vld [vmem:[%s1064 + $0x20] sm:$0xff]
      %v1070 = vld [vmem:[%s1064 + $0x28] sm:$0xff]
      %v1071 = vld [vmem:[%s1064 + $0x30] sm:$0xff]
      %v1072 = vld [vmem:[%s1064 + $0x38] sm:$0xff]
      %1077 = vrot.lane.b32.xlu0 %v474, 120
      %v1078 = vpop.permute.xlu0 %1077
      %1079 = vrot.lane.b32.xlu0 %v475, 120
      %v1080 = vpop.permute.xlu0 %1079
      %1081 = vrot.lane.b32.xlu0 %v476, 120
      %v1082 = vpop.permute.xlu0 %1081
      %1083 = vrot.lane.b32.xlu0 %v477, 120
      %v1084 = vpop.permute.xlu0 %1083
      %1085 = vrot.lane.b32.xlu0 %v482, 104
      %v1086 = vpop.permute.xlu0 %1085
      %1087 = vrot.lane.b32.xlu0 %v483, 104
      %v1088 = vpop.permute.xlu0 %1087
      %1089 = vrot.lane.b32.xlu0 %v484, 104
      %v1090 = vpop.permute.xlu0 %1089
      %1091 = vrot.lane.b32.xlu0 %v485, 104
      %v1092 = vpop.permute.xlu0 %1091
      %v1094 = vsel %vm510, %v1078, 0
      %v1097 = vsel %vm510, %v1080, 0
      %v1100 = vsel %vm510, %v1082, 0
      %v1103 = vsel %vm510, %v1084, 0
      %v1106 = vsel %vm510, %v1086, 0
      %v1109 = vsel %vm510, %v1088, 0
      %v1112 = vsel %vm510, %v1090, 0
      %v1115 = vsel %vm510, %v1092, 0
      %1117 = vmatprep.subr.bf16.mxu0 0
      %1118 = vmatpush1.bf16.xpose.msra.mxu0 %v1106
      %1119 = vmatprep.subr.bf16.mxu0 0
      %1120 = vmatpush1.bf16.xpose.msra.mxu0 %v1109
      %1121 = vmatprep.subr.bf16.mxu0 0
      %1122 = vmatpush1.bf16.xpose.msra.mxu0 %v1112
      %1123 = vmatprep.subr.bf16.mxu0 0
      %1124 = vmatpush1.bf16.xpose.msra.mxu0 %v1115
      %1125 = vmatprep.subr.bf16.mxu0 0
      %1126 = vmatpush1.bf16.xpose.msra.mxu0 0
      %1127 = vmatprep.subr.bf16.mxu0 0
      %1128 = vmatpush1.bf16.xpose.msra.mxu0 0
      %1129 = vmatprep.subr.bf16.mxu0 0
      %1130 = vmatpush1.bf16.xpose.msra.mxu0 0
      %1131 = vmatprep.subr.bf16.mxu0 0
      %1132 = vmatpush1.bf16.xpose.msra.mxu0 0
      %1133 = vmatprep.subr.bf16.mxu0 0
      %1134 = vmatpush1.bf16.xpose.msra.mxu0 0
      %1135 = vmatprep.subr.bf16.mxu0 0
      %1136 = vmatpush1.bf16.xpose.msra.mxu0 0
      %1137 = vmatprep.subr.bf16.mxu0 0
      %1138 = vmatpush1.bf16.xpose.msra.mxu0 0
      %1139 = vmatprep.subr.bf16.mxu0 0
      %1140 = vmatpush1.bf16.xpose.msra.mxu0 0
      %1141 = vmatprep.subr.bf16.mxu0 0
      %1142 = vmatpush1.bf16.xpose.msra.mxu0 0
      %1143 = vmatprep.subr.bf16.mxu0 0
      %1144 = vmatpush1.bf16.xpose.msra.mxu0 0
      %1145 = vmatprep.subr.bf16.mxu0 0
      %1146 = vmatpush1.bf16.xpose.msra.mxu0 0
      %1147 = vmatprep.subr.bf16.mxu0 0
      %1148 = vmatpush1.bf16.xpose.msra.mxu0 0
      %1149 = vmatprep.mubr.bf16.mxu0 0
      %1150 = vmatmul.mubr.bf16.gmra.mrb[0].mxu0 %v1094
      %v1151 = vpop.f32.mrb[0].mxu0
      %v1152 = vadd.f32 %v1065, %v1151
      %v1153 = vpop.f32.mrb[0].mxu0
      %v1154 = vpop.f32.mrb[0].mxu0
      %v1155 = vadd.f32 %v1066, %v1154
      %v1156 = vpop.f32.mrb[0].mxu0
      %1157 = vmatprep.mubr.bf16.mxu0 0
      %1158 = vmatmul.mubr.bf16.gmra.mrb[0].mxu0 %v1097
      %v1159 = vpop.f32.mrb[0].mxu0
      %v1160 = vadd.f32 %v1067, %v1159
      %v1161 = vpop.f32.mrb[0].mxu0
      %v1162 = vpop.f32.mrb[0].mxu0
      %v1163 = vadd.f32 %v1068, %v1162
      %v1164 = vpop.f32.mrb[0].mxu0
      %1165 = vmatprep.mubr.bf16.mxu0 0
      %1166 = vmatmul.mubr.bf16.gmra.mrb[0].mxu0 %v1100
      %v1167 = vpop.f32.mrb[0].mxu0
      %v1168 = vadd.f32 %v1069, %v1167
      %v1169 = vpop.f32.mrb[0].mxu0
      %v1170 = vpop.f32.mrb[0].mxu0
      %v1171 = vadd.f32 %v1070, %v1170
      %v1172 = vpop.f32.mrb[0].mxu0
      %1173 = vmatprep.mubr.bf16.mxu0 0
      %1174 = vmatmul.mubr.bf16.gmra.mrb[0].mxu0 %v1103
      %v1175 = vpop.f32.mrb[0].mxu0
      %v1176 = vadd.f32 %v1071, %v1175
      %v1177 = vpop.f32.mrb[0].mxu0
      %v1178 = vpop.f32.mrb[0].mxu0
      %v1179 = vadd.f32 %v1072, %v1178
      %v1180 = vpop.f32.mrb[0].mxu0
      %1181 = vdwg.mxu0
      %1186 = vrot.lane.b32.xlu0 %v478, 120
      %v1187 = vpop.permute.xlu0 %1186
      %1188 = vrot.lane.b32.xlu0 %v479, 120
      %v1189 = vpop.permute.xlu0 %1188
      %1190 = vrot.lane.b32.xlu0 %v480, 120
      %v1191 = vpop.permute.xlu0 %1190
      %1192 = vrot.lane.b32.xlu0 %v481, 120
      %v1193 = vpop.permute.xlu0 %1192
      %1194 = vrot.lane.b32.xlu0 %v486, 104
      %v1195 = vpop.permute.xlu0 %1194
      %1196 = vrot.lane.b32.xlu0 %v487, 104
      %v1197 = vpop.permute.xlu0 %1196
      %1198 = vrot.lane.b32.xlu0 %v488, 104
      %v1199 = vpop.permute.xlu0 %1198
      %1200 = vrot.lane.b32.xlu0 %v489, 104
      %v1201 = vpop.permute.xlu0 %1200
      %v1203 = vsel %vm510, %v1187, 0
      %v1206 = vsel %vm510, %v1189, 0
      %v1209 = vsel %vm510, %v1191, 0
      %v1212 = vsel %vm510, %v1193, 0
      %v1215 = vsel %vm510, %v1195, 0
      %v1218 = vsel %vm510, %v1197, 0
      %v1221 = vsel %vm510, %v1199, 0
      %v1224 = vsel %vm510, %v1201, 0
      %1226 = vmatprep.subr.bf16.mxu0 0
      %1227 = vmatpush1.bf16.xpose.msra.mxu0 %v1215
      %1228 = vmatprep.subr.bf16.mxu0 0
      %1229 = vmatpush1.bf16.xpose.msra.mxu0 %v1218
      %1230 = vmatprep.subr.bf16.mxu0 0
      %1231 = vmatpush1.bf16.xpose.msra.mxu0 %v1221
      %1232 = vmatprep.subr.bf16.mxu0 0
      %1233 = vmatpush1.bf16.xpose.msra.mxu0 %v1224
      %1234 = vmatprep.subr.bf16.mxu0 0
      %1235 = vmatpush1.bf16.xpose.msra.mxu0 0
      %1236 = vmatprep.subr.bf16.mxu0 0
      %1237 = vmatpush1.bf16.xpose.msra.mxu0 0
      %1238 = vmatprep.subr.bf16.mxu0 0
      %1239 = vmatpush1.bf16.xpose.msra.mxu0 0
      %1240 = vmatprep.subr.bf16.mxu0 0
      %1241 = vmatpush1.bf16.xpose.msra.mxu0 0
      %1242 = vmatprep.subr.bf16.mxu0 0
      %1243 = vmatpush1.bf16.xpose.msra.mxu0 0
      %1244 = vmatprep.subr.bf16.mxu0 0
      %1245 = vmatpush1.bf16.xpose.msra.mxu0 0
      %1246 = vmatprep.subr.bf16.mxu0 0
      %1247 = vmatpush1.bf16.xpose.msra.mxu0 0
      %1248 = vmatprep.subr.bf16.mxu0 0
      %1249 = vmatpush1.bf16.xpose.msra.mxu0 0
      %1250 = vmatprep.subr.bf16.mxu0 0
      %1251 = vmatpush1.bf16.xpose.msra.mxu0 0
      %1252 = vmatprep.subr.bf16.mxu0 0
      %1253 = vmatpush1.bf16.xpose.msra.mxu0 0
      %1254 = vmatprep.subr.bf16.mxu0 0
      %1255 = vmatpush1.bf16.xpose.msra.mxu0 0
      %1256 = vmatprep.subr.bf16.mxu0 0
      %1257 = vmatpush1.bf16.xpose.msra.mxu0 0
      %1258 = vmatprep.mubr.bf16.mxu0 0
      %1259 = vmatmul.mubr.bf16.gmra.mrb[0].mxu0 %v1203
      %v1260 = vpop.f32.mrb[0].mxu0
      %v1261 = vadd.f32 %v1065, %v1260
      %v1262 = vpop.f32.mrb[0].mxu0
      %v1263 = vpop.f32.mrb[0].mxu0
      %v1264 = vadd.f32 %v1066, %v1263
      %v1265 = vpop.f32.mrb[0].mxu0
      %1266 = vmatprep.mubr.bf16.mxu0 0
      %1267 = vmatmul.mubr.bf16.gmra.mrb[0].mxu0 %v1206
      %v1268 = vpop.f32.mrb[0].mxu0
      %v1269 = vadd.f32 %v1067, %v1268
      %v1270 = vpop.f32.mrb[0].mxu0
      %v1271 = vpop.f32.mrb[0].mxu0
      %v1272 = vadd.f32 %v1068, %v1271
      %v1273 = vpop.f32.mrb[0].mxu0
      %1274 = vmatprep.mubr.bf16.mxu0 0
      %1275 = vmatmul.mubr.bf16.gmra.mrb[0].mxu0 %v1209
      %v1276 = vpop.f32.mrb[0].mxu0
      %v1277 = vadd.f32 %v1069, %v1276
      %v1278 = vpop.f32.mrb[0].mxu0
      %v1279 = vpop.f32.mrb[0].mxu0
      %v1280 = vadd.f32 %v1070, %v1279
      %v1281 = vpop.f32.mrb[0].mxu0
      %1282 = vmatprep.mubr.bf16.mxu0 0
      %1283 = vmatmul.mubr.bf16.gmra.mrb[0].mxu0 %v1212
      %v1284 = vpop.f32.mrb[0].mxu0
      %v1285 = vadd.f32 %v1071, %v1284
      %v1286 = vpop.f32.mrb[0].mxu0
      %v1287 = vpop.f32.mrb[0].mxu0
      %v1288 = vadd.f32 %v1072, %v1287
      %v1289 = vpop.f32.mrb[0].mxu0
      %1290 = vdwg.mxu0
      %v1291 = vsel %vm701, %v1152, -inf
      %1292 = vmax.xlane.f32.xlu0 %v1291
      %v1293 = vpop.xlane.xlu0 %1292
      %v1294 = vsel %vm701, %v1155, -inf
      %1295 = vmax.xlane.f32.xlu0 %v1294
      %v1296 = vpop.xlane.xlu0 %1295
      %v1297 = vsel %vm701, %v1160, -inf
      %1298 = vmax.xlane.f32.xlu0 %v1297
      %v1299 = vpop.xlane.xlu0 %1298
      %v1300 = vsel %vm701, %v1163, -inf
      %1301 = vmax.xlane.f32.xlu0 %v1300
      %v1302 = vpop.xlane.xlu0 %1301
      %v1303 = vsel %vm701, %v1168, -inf
      %1304 = vmax.xlane.f32.xlu0 %v1303
      %v1305 = vpop.xlane.xlu0 %1304
      %v1306 = vsel %vm701, %v1171, -inf
      %1307 = vmax.xlane.f32.xlu0 %v1306
      %v1308 = vpop.xlane.xlu0 %1307
      %v1309 = vsel %vm701, %v1176, -inf
      %1310 = vmax.xlane.f32.xlu0 %v1309
      %v1311 = vpop.xlane.xlu0 %1310
      %v1312 = vsel %vm701, %v1179, -inf
      %1313 = vmax.xlane.f32.xlu0 %v1312
      %v1314 = vpop.xlane.xlu0 %1313
      %v1315 = vsel %vm701, %v1261, -inf
      %1316 = vmax.xlane.f32.xlu0 %v1315
      %v1317 = vpop.xlane.xlu0 %1316
      %v1318 = vsel %vm701, %v1264, -inf
      %1319 = vmax.xlane.f32.xlu0 %v1318
      %v1320 = vpop.xlane.xlu0 %1319
      %v1321 = vsel %vm701, %v1269, -inf
      %1322 = vmax.xlane.f32.xlu0 %v1321
      %v1323 = vpop.xlane.xlu0 %1322
      %v1324 = vsel %vm701, %v1272, -inf
      %1325 = vmax.xlane.f32.xlu0 %v1324
      %v1326 = vpop.xlane.xlu0 %1325
      %v1327 = vsel %vm701, %v1277, -inf
      %1328 = vmax.xlane.f32.xlu0 %v1327
      %v1329 = vpop.xlane.xlu0 %1328
      %v1330 = vsel %vm701, %v1280, -inf
      %1331 = vmax.xlane.f32.xlu0 %v1330
      %v1332 = vpop.xlane.xlu0 %1331
      %v1333 = vsel %vm701, %v1285, -inf
      %1334 = vmax.xlane.f32.xlu0 %v1333
      %v1335 = vpop.xlane.xlu0 %1334
      %v1336 = vsel %vm701, %v1288, -inf
      %1337 = vmax.xlane.f32.xlu0 %v1336
      %v1338 = vpop.xlane.xlu0 %1337
      %v1339 = vsub.f32 %v1152, %v1293
      %v1340 = vsub.f32 %v1155, %v1296
      %v1341 = vsub.f32 %v1160, %v1299
      %v1342 = vsub.f32 %v1163, %v1302
      %v1343 = vsub.f32 %v1168, %v1305
      %v1344 = vsub.f32 %v1171, %v1308
      %v1345 = vsub.f32 %v1176, %v1311
      %v1346 = vsub.f32 %v1179, %v1314
      %v1347 = vsub.f32 %v1261, %v1317
      %v1348 = vsub.f32 %v1264, %v1320
      %v1349 = vsub.f32 %v1269, %v1323
      %v1350 = vsub.f32 %v1272, %v1326
      %v1351 = vsub.f32 %v1277, %v1329
      %v1352 = vsub.f32 %v1280, %v1332
      %v1353 = vsub.f32 %v1285, %v1335
      %v1354 = vsub.f32 %v1288, %v1338
      %v1355 = vmul.f32 %v1339, 1.442695
      %v1356 = vpow.pop %v1355
      %v1357 = vmul.f32 %v1340, 1.442695
      %v1358 = vpow.pop %v1357
      %v1359 = vmul.f32 %v1341, 1.442695
      %v1360 = vpow.pop %v1359
      %v1361 = vmul.f32 %v1342, 1.442695
      %v1362 = vpow.pop %v1361
      %v1363 = vmul.f32 %v1343, 1.442695
      %v1364 = vpow.pop %v1363
      %v1365 = vmul.f32 %v1344, 1.442695
      %v1366 = vpow.pop %v1365
      %v1367 = vmul.f32 %v1345, 1.442695
      %v1368 = vpow.pop %v1367
      %v1369 = vmul.f32 %v1346, 1.442695
      %v1370 = vpow.pop %v1369
      %v1371 = vmul.f32 %v1347, 1.442695
      %v1372 = vpow.pop %v1371
      %v1373 = vmul.f32 %v1348, 1.442695
      %v1374 = vpow.pop %v1373
      %v1375 = vmul.f32 %v1349, 1.442695
      %v1376 = vpow.pop %v1375
      %v1377 = vmul.f32 %v1350, 1.442695
      %v1378 = vpow.pop %v1377
      %v1379 = vmul.f32 %v1351, 1.442695
      %v1380 = vpow.pop %v1379
      %v1381 = vmul.f32 %v1352, 1.442695
      %v1382 = vpow.pop %v1381
      %v1383 = vmul.f32 %v1353, 1.442695
      %v1384 = vpow.pop %v1383
      %v1385 = vmul.f32 %v1354, 1.442695
      %v1386 = vpow.pop %v1385
      %v1387 = vsel %vm701, %v1356, 0.0
      %1388 = vadd.xlane.f32.xlu0 %v1387
      %v1389 = vpop.xlane.xlu0 %1388
      %v1390 = vsel %vm701, %v1358, 0.0
      %1391 = vadd.xlane.f32.xlu0 %v1390
      %v1392 = vpop.xlane.xlu0 %1391
      %v1393 = vsel %vm701, %v1360, 0.0
      %1394 = vadd.xlane.f32.xlu0 %v1393
      %v1395 = vpop.xlane.xlu0 %1394
      %v1396 = vsel %vm701, %v1362, 0.0
      %1397 = vadd.xlane.f32.xlu0 %v1396
      %v1398 = vpop.xlane.xlu0 %1397
      %v1399 = vsel %vm701, %v1364, 0.0
      %1400 = vadd.xlane.f32.xlu0 %v1399
      %v1401 = vpop.xlane.xlu0 %1400
      %v1402 = vsel %vm701, %v1366, 0.0
      %1403 = vadd.xlane.f32.xlu0 %v1402
      %v1404 = vpop.xlane.xlu0 %1403
      %v1405 = vsel %vm701, %v1368, 0.0
      %1406 = vadd.xlane.f32.xlu0 %v1405
      %v1407 = vpop.xlane.xlu0 %1406
      %v1408 = vsel %vm701, %v1370, 0.0
      %1409 = vadd.xlane.f32.xlu0 %v1408
      %v1410 = vpop.xlane.xlu0 %1409
      %v1411 = vsel %vm701, %v1372, 0.0
      %1412 = vadd.xlane.f32.xlu0 %v1411
      %v1413 = vpop.xlane.xlu0 %1412
      %v1414 = vsel %vm701, %v1374, 0.0
      %1415 = vadd.xlane.f32.xlu0 %v1414
      %v1416 = vpop.xlane.xlu0 %1415
      %v1417 = vsel %vm701, %v1376, 0.0
      %1418 = vadd.xlane.f32.xlu0 %v1417
      %v1419 = vpop.xlane.xlu0 %1418
      %v1420 = vsel %vm701, %v1378, 0.0
      %1421 = vadd.xlane.f32.xlu0 %v1420
      %v1422 = vpop.xlane.xlu0 %1421
      %v1423 = vsel %vm701, %v1380, 0.0
      %1424 = vadd.xlane.f32.xlu0 %v1423
      %v1425 = vpop.xlane.xlu0 %1424
      %v1426 = vsel %vm701, %v1382, 0.0
      %1427 = vadd.xlane.f32.xlu0 %v1426
      %v1428 = vpop.xlane.xlu0 %1427
      %v1429 = vsel %vm701, %v1384, 0.0
      %1430 = vadd.xlane.f32.xlu0 %v1429
      %v1431 = vpop.xlane.xlu0 %1430
      %v1432 = vsel %vm701, %v1386, 0.0
      %1433 = vadd.xlane.f32.xlu0 %v1432
      %v1434 = vpop.xlane.xlu0 %1433
      %v1435 = vpack.c.bf16 %v1358, %v1356
      %v1436 = vpack.c.bf16 %v1362, %v1360
      %v1437 = vpack.c.bf16 %v1366, %v1364
      %v1438 = vpack.c.bf16 %v1370, %v1368
      %v1439 = vpack.c.bf16 %v1374, %v1372
      %v1440 = vpack.c.bf16 %v1378, %v1376
      %v1441 = vpack.c.bf16 %v1382, %v1380
      %v1442 = vpack.c.bf16 %v1386, %v1384
      %1443 = vrot.lane.b32.xlu0 %v482, 88
      %v1444 = vpop.permute.xlu0 %1443
      %1445 = vrot.lane.b32.xlu0 %v483, 88
      %v1446 = vpop.permute.xlu0 %1445
      %1447 = vrot.lane.b32.xlu0 %v484, 88
      %v1448 = vpop.permute.xlu0 %1447
      %1449 = vrot.lane.b32.xlu0 %v485, 88
      %v1450 = vpop.permute.xlu0 %1449
      %v1456 = vsel %vm701, %v1435, 0
      %v1459 = vsel %vm701, %v1436, 0
      %v1462 = vsel %vm701, %v1437, 0
      %v1465 = vsel %vm701, %v1438, 0
      %1467 = vmatprep.subr.bf16.mxu0 0
      %1468 = vmatpush1.bf16.msra.mxu0 %v1444
      %1469 = vmatprep.subr.bf16.mxu0 0
      %1470 = vmatpush1.bf16.msra.mxu0 %v1446
      %1471 = vmatprep.subr.bf16.mxu0 0
      %1472 = vmatpush1.bf16.msra.mxu0 %v1448
      %1473 = vmatprep.subr.bf16.mxu0 0
      %1474 = vmatpush1.bf16.msra.mxu0 %v1450
      %1475 = vmatprep.subr.bf16.mxu0 0
      %1476 = vmatpush1.bf16.msra.mxu0 0
      %1477 = vmatprep.subr.bf16.mxu0 0
      %1478 = vmatpush1.bf16.msra.mxu0 0
      %1479 = vmatprep.subr.bf16.mxu0 0
      %1480 = vmatpush1.bf16.msra.mxu0 0
      %1481 = vmatprep.subr.bf16.mxu0 0
      %1482 = vmatpush1.bf16.msra.mxu0 0
      %1483 = vmatprep.subr.bf16.mxu0 0
      %1484 = vmatpush1.bf16.msra.mxu0 0
      %1485 = vmatprep.subr.bf16.mxu0 0
      %1486 = vmatpush1.bf16.msra.mxu0 0
      %1487 = vmatprep.subr.bf16.mxu0 0
      %1488 = vmatpush1.bf16.msra.mxu0 0
      %1489 = vmatprep.subr.bf16.mxu0 0
      %1490 = vmatpush1.bf16.msra.mxu0 0
      %1491 = vmatprep.subr.bf16.mxu0 0
      %1492 = vmatpush1.bf16.msra.mxu0 0
      %1493 = vmatprep.subr.bf16.mxu0 0
      %1494 = vmatpush1.bf16.msra.mxu0 0
      %1495 = vmatprep.subr.bf16.mxu0 0
      %1496 = vmatpush1.bf16.msra.mxu0 0
      %1497 = vmatprep.subr.bf16.mxu0 0
      %1498 = vmatpush1.bf16.msra.mxu0 0
      %1499 = vmatprep.mubr.bf16.mxu0 0
      %1500 = vmatmul.mubr.bf16.gmra.mrb[0].mxu0 %v1456
      %v1501 = vpop.f32.mrb[0].mxu0
      %v1502 = vadd.f32 0.0, %v1501
      %v1503 = vpop.f32.mrb[0].mxu0
      %v1504 = vpop.f32.mrb[0].mxu0
      %v1505 = vadd.f32 0.0, %v1504
      %v1506 = vpop.f32.mrb[0].mxu0
      %1507 = vmatprep.mubr.bf16.mxu0 0
      %1508 = vmatmul.mubr.bf16.gmra.mrb[0].mxu0 %v1459
      %v1509 = vpop.f32.mrb[0].mxu0
      %v1510 = vadd.f32 0.0, %v1509
      %v1511 = vpop.f32.mrb[0].mxu0
      %v1512 = vpop.f32.mrb[0].mxu0
      %v1513 = vadd.f32 0.0, %v1512
      %v1514 = vpop.f32.mrb[0].mxu0
      %1515 = vmatprep.mubr.bf16.mxu0 0
      %1516 = vmatmul.mubr.bf16.gmra.mrb[0].mxu0 %v1462
      %v1517 = vpop.f32.mrb[0].mxu0
      %v1518 = vadd.f32 0.0, %v1517
      %v1519 = vpop.f32.mrb[0].mxu0
      %v1520 = vpop.f32.mrb[0].mxu0
      %v1521 = vadd.f32 0.0, %v1520
      %v1522 = vpop.f32.mrb[0].mxu0
      %1523 = vmatprep.mubr.bf16.mxu0 0
      %1524 = vmatmul.mubr.bf16.gmra.mrb[0].mxu0 %v1465
      %v1525 = vpop.f32.mrb[0].mxu0
      %v1526 = vadd.f32 0.0, %v1525
      %v1527 = vpop.f32.mrb[0].mxu0
      %v1528 = vpop.f32.mrb[0].mxu0
      %v1529 = vadd.f32 0.0, %v1528
      %v1530 = vpop.f32.mrb[0].mxu0
      %1531 = vdwg.mxu0
      %1532 = vrot.lane.b32.xlu0 %v486, 88
      %v1533 = vpop.permute.xlu0 %1532
      %1534 = vrot.lane.b32.xlu0 %v487, 88
      %v1535 = vpop.permute.xlu0 %1534
      %1536 = vrot.lane.b32.xlu0 %v488, 88
      %v1537 = vpop.permute.xlu0 %1536
      %1538 = vrot.lane.b32.xlu0 %v489, 88
      %v1539 = vpop.permute.xlu0 %1538
      %v1545 = vsel %vm701, %v1439, 0
      %v1548 = vsel %vm701, %v1440, 0
      %v1551 = vsel %vm701, %v1441, 0
      %v1554 = vsel %vm701, %v1442, 0
      %1556 = vmatprep.subr.bf16.mxu0 0
      %1557 = vmatpush1.bf16.msra.mxu0 %v1533
      %1558 = vmatprep.subr.bf16.mxu0 0
      %1559 = vmatpush1.bf16.msra.mxu0 %v1535
      %1560 = vmatprep.subr.bf16.mxu0 0
      %1561 = vmatpush1.bf16.msra.mxu0 %v1537
      %1562 = vmatprep.subr.bf16.mxu0 0
      %1563 = vmatpush1.bf16.msra.mxu0 %v1539
      %1564 = vmatprep.subr.bf16.mxu0 0
      %1565 = vmatpush1.bf16.msra.mxu0 0
      %1566 = vmatprep.subr.bf16.mxu0 0
      %1567 = vmatpush1.bf16.msra.mxu0 0
      %1568 = vmatprep.subr.bf16.mxu0 0
      %1569 = vmatpush1.bf16.msra.mxu0 0
      %1570 = vmatprep.subr.bf16.mxu0 0
      %1571 = vmatpush1.bf16.msra.mxu0 0
      %1572 = vmatprep.subr.bf16.mxu0 0
      %1573 = vmatpush1.bf16.msra.mxu0 0
      %1574 = vmatprep.subr.bf16.mxu0 0
      %1575 = vmatpush1.bf16.msra.mxu0 0
      %1576 = vmatprep.subr.bf16.mxu0 0
      %1577 = vmatpush1.bf16.msra.mxu0 0
      %1578 = vmatprep.subr.bf16.mxu0 0
      %1579 = vmatpush1.bf16.msra.mxu0 0
      %1580 = vmatprep.subr.bf16.mxu0 0
      %1581 = vmatpush1.bf16.msra.mxu0 0
      %1582 = vmatprep.subr.bf16.mxu0 0
      %1583 = vmatpush1.bf16.msra.mxu0 0
      %1584 = vmatprep.subr.bf16.mxu0 0
      %1585 = vmatpush1.bf16.msra.mxu0 0
      %1586 = vmatprep.subr.bf16.mxu0 0
      %1587 = vmatpush1.bf16.msra.mxu0 0
      %1588 = vmatprep.mubr.bf16.mxu0 0
      %1589 = vmatmul.mubr.bf16.gmra.mrb[0].mxu0 %v1545
      %v1590 = vpop.f32.mrb[0].mxu0
      %v1591 = vadd.f32 0.0, %v1590
      %v1592 = vpop.f32.mrb[0].mxu0
      %v1593 = vpop.f32.mrb[0].mxu0
      %v1594 = vadd.f32 0.0, %v1593
      %v1595 = vpop.f32.mrb[0].mxu0
      %1596 = vmatprep.mubr.bf16.mxu0 0
      %1597 = vmatmul.mubr.bf16.gmra.mrb[0].mxu0 %v1548
      %v1598 = vpop.f32.mrb[0].mxu0
      %v1599 = vadd.f32 0.0, %v1598
      %v1600 = vpop.f32.mrb[0].mxu0
      %v1601 = vpop.f32.mrb[0].mxu0
      %v1602 = vadd.f32 0.0, %v1601
      %v1603 = vpop.f32.mrb[0].mxu0
      %1604 = vmatprep.mubr.bf16.mxu0 0
      %1605 = vmatmul.mubr.bf16.gmra.mrb[0].mxu0 %v1551
      %v1606 = vpop.f32.mrb[0].mxu0
      %v1607 = vadd.f32 0.0, %v1606
      %v1608 = vpop.f32.mrb[0].mxu0
      %v1609 = vpop.f32.mrb[0].mxu0
      %v1610 = vadd.f32 0.0, %v1609
      %v1611 = vpop.f32.mrb[0].mxu0
      %1612 = vmatprep.mubr.bf16.mxu0 0
      %1613 = vmatmul.mubr.bf16.gmra.mrb[0].mxu0 %v1554
      %v1614 = vpop.f32.mrb[0].mxu0
      %v1615 = vadd.f32 0.0, %v1614
      %v1616 = vpop.f32.mrb[0].mxu0
      %v1617 = vpop.f32.mrb[0].mxu0
      %v1618 = vadd.f32 0.0, %v1617
      %v1619 = vpop.f32.mrb[0].mxu0
      %1620 = vdwg.mxu0
      %v1621 = vrcp.pop %v1389
      %v1622 = vrcp.pop %v1392
      %v1623 = vrcp.pop %v1395
      %v1624 = vrcp.pop %v1398
      %v1625 = vrcp.pop %v1401
      %v1626 = vrcp.pop %v1404
      %v1627 = vrcp.pop %v1407
      %v1628 = vrcp.pop %v1410
      %v1629 = vrcp.pop %v1413
      %v1630 = vrcp.pop %v1416
      %v1631 = vrcp.pop %v1419
      %v1632 = vrcp.pop %v1422
      %v1633 = vrcp.pop %v1425
      %v1634 = vrcp.pop %v1428
      %v1635 = vrcp.pop %v1431
      %v1636 = vrcp.pop %v1434
      %v1637 = vmul.f32 %v1502, %v1621
      %v1638 = vmul.f32 %v1505, %v1622
      %v1639 = vmul.f32 %v1510, %v1623
      %v1640 = vmul.f32 %v1513, %v1624
      %v1641 = vmul.f32 %v1518, %v1625
      %v1642 = vmul.f32 %v1521, %v1626
      %v1643 = vmul.f32 %v1526, %v1627
      %v1644 = vmul.f32 %v1529, %v1628
      %v1645 = vmul.f32 %v1591, %v1629
      %v1646 = vmul.f32 %v1594, %v1630
      %v1647 = vmul.f32 %v1599, %v1631
      %v1648 = vmul.f32 %v1602, %v1632
      %v1649 = vmul.f32 %v1607, %v1633
      %v1650 = vmul.f32 %v1610, %v1634
      %v1651 = vmul.f32 %v1615, %v1635
      %v1652 = vmul.f32 %v1618, %v1636
      %1669 = vrot.lane.b32.xlu0 %v1637, 8
      %v1670 = vpop.permute.xlu0 %1669
      %1671 = vrot.lane.b32.xlu0 %v1638, 8
      %v1672 = vpop.permute.xlu0 %1671
      %1673 = vrot.lane.b32.xlu0 %v1639, 8
      %v1674 = vpop.permute.xlu0 %1673
      %1675 = vrot.lane.b32.xlu0 %v1640, 8
      %v1676 = vpop.permute.xlu0 %1675
      %1677 = vrot.lane.b32.xlu0 %v1641, 8
      %v1678 = vpop.permute.xlu0 %1677
      %1679 = vrot.lane.b32.xlu0 %v1642, 8
      %v1680 = vpop.permute.xlu0 %1679
      %1681 = vrot.lane.b32.xlu0 %v1643, 8
      %v1682 = vpop.permute.xlu0 %1681
      %1683 = vrot.lane.b32.xlu0 %v1644, 8
      %v1684 = vpop.permute.xlu0 %1683
      %1685 = vrot.lane.b32.xlu0 %v1645, 8
      %v1686 = vpop.permute.xlu0 %1685
      %1687 = vrot.lane.b32.xlu0 %v1646, 8
      %v1688 = vpop.permute.xlu0 %1687
      %1689 = vrot.lane.b32.xlu0 %v1647, 8
      %v1690 = vpop.permute.xlu0 %1689
      %1691 = vrot.lane.b32.xlu0 %v1648, 8
      %v1692 = vpop.permute.xlu0 %1691
      %1693 = vrot.lane.b32.xlu0 %v1649, 8
      %v1694 = vpop.permute.xlu0 %1693
      %1695 = vrot.lane.b32.xlu0 %v1650, 8
      %v1696 = vpop.permute.xlu0 %1695
      %1697 = vrot.lane.b32.xlu0 %v1651, 8
      %v1698 = vpop.permute.xlu0 %1697
      %1699 = vrot.lane.b32.xlu0 %v1652, 8
      %v1700 = vpop.permute.xlu0 %1699
      %v1717 = vsel %vm510, %v1048, %v1670
      %v1718 = vsel %vm510, %v1049, %v1672
      %v1719 = vsel %vm510, %v1050, %v1674
      %v1720 = vsel %vm510, %v1051, %v1676
      %v1721 = vsel %vm510, %v1052, %v1678
      %v1722 = vsel %vm510, %v1053, %v1680
      %v1723 = vsel %vm510, %v1054, %v1682
      %v1724 = vsel %vm510, %v1055, %v1684
      %v1725 = vsel %vm510, %v1056, %v1686
      %v1726 = vsel %vm510, %v1057, %v1688
      %v1727 = vsel %vm510, %v1058, %v1690
      %v1728 = vsel %vm510, %v1059, %v1692
      %v1729 = vsel %vm510, %v1060, %v1694
      %v1730 = vsel %vm510, %v1061, %v1696
      %v1731 = vsel %vm510, %v1062, %v1698
      %v1732 = vsel %vm510, %v1063, %v1700
      %v1733 = vpack.c.bf16 %v1718, %v1717
      %v1734 = vpack.c.bf16 %v1720, %v1719
      %v1735 = vpack.c.bf16 %v1722, %v1721
      %v1736 = vpack.c.bf16 %v1724, %v1723
      %v1737 = vpack.c.bf16 %v1726, %v1725
      %v1738 = vpack.c.bf16 %v1728, %v1727
      %v1739 = vpack.c.bf16 %v1730, %v1729
      %v1740 = vpack.c.bf16 %v1732, %v1731
      %v1741 = vld [vmem:[%s4] sm:$0xf]
      %v1742 = vld [vmem:[%s4 + $0x4] sm:$0xf]
      %v1743 = vld [vmem:[%s5] sm:$0x1]
      %v1745 = vlaneseq
      %v1746 = vshrl.u32 %v1745, 7
      %v1747 = vsub.s32 0, %v1746
      %v1748 = vrot.slane %v1743, %v1747
      %v1752 = vunpack.c.l.b16 %v1741
      %v1753 = vunpack.c.l.b16 %v1742
      %v1754 = vpack.c.b16 %v1753, %v1752
      %v1757 = vsel %vm336, %v1733, 0
      %v1760 = vsel %vm336, %v1734, 0
      %v1763 = vsel %vm336, %v1735, 0
      %v1766 = vsel %vm336, %v1736, 0
      %v1769 = vsel %vm336, %v1737, 0
      %v1772 = vsel %vm336, %v1738, 0
      %v1775 = vsel %vm336, %v1739, 0
      %v1778 = vsel %vm336, %v1740, 0
      %1780 = vmatprep.subr.bf16.mxu0 0
      %1781 = vmatpush1.bf16.msra.mxu0 %v1754
      %1782 = vmatprep.subr.bf16.mxu0 0
      %1783 = vmatpush1.bf16.msra.mxu0 0
      %1784 = vmatprep.subr.bf16.mxu0 0
      %1785 = vmatpush1.bf16.msra.mxu0 0
      %1786 = vmatprep.subr.bf16.mxu0 0
      %1787 = vmatpush1.bf16.msra.mxu0 0
      %1788 = vmatprep.subr.bf16.mxu0 0
      %1789 = vmatpush1.bf16.msra.mxu0 0
      %1790 = vmatprep.subr.bf16.mxu0 0
      %1791 = vmatpush1.bf16.msra.mxu0 0
      %1792 = vmatprep.subr.bf16.mxu0 0
      %1793 = vmatpush1.bf16.msra.mxu0 0
      %1794 = vmatprep.subr.bf16.mxu0 0
      %1795 = vmatpush1.bf16.msra.mxu0 0
      %1796 = vmatprep.subr.bf16.mxu0 0
      %1797 = vmatpush1.bf16.msra.mxu0 0
      %1798 = vmatprep.subr.bf16.mxu0 0
      %1799 = vmatpush1.bf16.msra.mxu0 0
      %1800 = vmatprep.subr.bf16.mxu0 0
      %1801 = vmatpush1.bf16.msra.mxu0 0
      %1802 = vmatprep.subr.bf16.mxu0 0
      %1803 = vmatpush1.bf16.msra.mxu0 0
      %1804 = vmatprep.subr.bf16.mxu0 0
      %1805 = vmatpush1.bf16.msra.mxu0 0
      %1806 = vmatprep.subr.bf16.mxu0 0
      %1807 = vmatpush1.bf16.msra.mxu0 0
      %1808 = vmatprep.subr.bf16.mxu0 0
      %1809 = vmatpush1.bf16.msra.mxu0 0
      %1810 = vmatprep.subr.bf16.mxu0 0
      %1811 = vmatpush1.bf16.msra.mxu0 0
      %1812 = vmatprep.mubr.bf16.mxu0 0
      %1813 = vmatmul.mubr.bf16.gmra.mrb[0].mxu0 %v1757
      %v1814 = vpop.f32.mrb[0].mxu0
      %v1815 = vadd.f32 %v1748, %v1814
      %v1816 = vpop.f32.mrb[0].mxu0
      %v1817 = vpop.f32.mrb[0].mxu0
      %v1818 = vadd.f32 %v1748, %v1817
      %v1819 = vpop.f32.mrb[0].mxu0
      %1820 = vmatprep.mubr.bf16.mxu0 0
      %1821 = vmatmul.mubr.bf16.gmra.mrb[0].mxu0 %v1760
      %v1822 = vpop.f32.mrb[0].mxu0
      %v1823 = vadd.f32 %v1748, %v1822
      %v1824 = vpop.f32.mrb[0].mxu0
      %v1825 = vpop.f32.mrb[0].mxu0
      %v1826 = vadd.f32 %v1748, %v1825
      %v1827 = vpop.f32.mrb[0].mxu0
      %1828 = vmatprep.mubr.bf16.mxu0 0
      %1829 = vmatmul.mubr.bf16.gmra.mrb[0].mxu0 %v1763
      %v1830 = vpop.f32.mrb[0].mxu0
      %v1831 = vadd.f32 %v1748, %v1830
      %v1832 = vpop.f32.mrb[0].mxu0
      %v1833 = vpop.f32.mrb[0].mxu0
      %v1834 = vadd.f32 %v1748, %v1833
      %v1835 = vpop.f32.mrb[0].mxu0
      %1836 = vmatprep.mubr.bf16.mxu0 0
      %1837 = vmatmul.mubr.bf16.gmra.mrb[0].mxu0 %v1766
      %v1838 = vpop.f32.mrb[0].mxu0
      %v1839 = vadd.f32 %v1748, %v1838
      %v1840 = vpop.f32.mrb[0].mxu0
      %v1841 = vpop.f32.mrb[0].mxu0
      %v1842 = vadd.f32 %v1748, %v1841
      %v1843 = vpop.f32.mrb[0].mxu0
      %1844 = vmatprep.mubr.bf16.mxu0 0
      %1845 = vmatmul.mubr.bf16.gmra.mrb[0].mxu0 %v1769
      %v1846 = vpop.f32.mrb[0].mxu0
      %v1847 = vadd.f32 %v1748, %v1846
      %v1848 = vpop.f32.mrb[0].mxu0
      %v1849 = vpop.f32.mrb[0].mxu0
      %v1850 = vadd.f32 %v1748, %v1849
      %v1851 = vpop.f32.mrb[0].mxu0
      %1852 = vmatprep.mubr.bf16.mxu0 0
      %1853 = vmatmul.mubr.bf16.gmra.mrb[0].mxu0 %v1772
      %v1854 = vpop.f32.mrb[0].mxu0
      %v1855 = vadd.f32 %v1748, %v1854
      %v1856 = vpop.f32.mrb[0].mxu0
      %v1857 = vpop.f32.mrb[0].mxu0
      %v1858 = vadd.f32 %v1748, %v1857
      %v1859 = vpop.f32.mrb[0].mxu0
      %1860 = vmatprep.mubr.bf16.mxu0 0
      %1861 = vmatmul.mubr.bf16.gmra.mrb[0].mxu0 %v1775
      %v1862 = vpop.f32.mrb[0].mxu0
      %v1863 = vadd.f32 %v1748, %v1862
      %v1864 = vpop.f32.mrb[0].mxu0
      %v1865 = vpop.f32.mrb[0].mxu0
      %v1866 = vadd.f32 %v1748, %v1865
      %v1867 = vpop.f32.mrb[0].mxu0
      %1868 = vmatprep.mubr.bf16.mxu0 0
      %1869 = vmatmul.mubr.bf16.gmra.mrb[0].mxu0 %v1778
      %v1870 = vpop.f32.mrb[0].mxu0
      %v1871 = vadd.f32 %v1748, %v1870
      %v1872 = vpop.f32.mrb[0].mxu0
      %v1873 = vpop.f32.mrb[0].mxu0
      %v1874 = vadd.f32 %v1748, %v1873
      %v1875 = vpop.f32.mrb[0].mxu0
      %1876 = vdwg.mxu0
      %1877 = vst.msk [vmem:[%s294] sm:$0xff] %vm336, %v1815
      %1878 = vst.msk [vmem:[%s294 + $0x10] sm:$0xff] %vm336, %v1818
      %1879 = vst.msk [vmem:[%s294 + $0x20] sm:$0xff] %vm336, %v1823
      %1880 = vst.msk [vmem:[%s294 + $0x30] sm:$0xff] %vm336, %v1826
      %1881 = vst.msk [vmem:[%s294 + $0x40] sm:$0xff] %vm336, %v1831
      %1882 = vst.msk [vmem:[%s294 + $0x50] sm:$0xff] %vm336, %v1834
      %1883 = vst.msk [vmem:[%s294 + $0x60] sm:$0xff] %vm336, %v1839
      %1884 = vst.msk [vmem:[%s294 + $0x70] sm:$0xff] %vm336, %v1842
      %1885 = vst.msk [vmem:[%s294 + $0x8] sm:$0xff] %vm336, %v1847
      %1886 = vst.msk [vmem:[%s294 + $0x18] sm:$0xff] %vm336, %v1850
      %1887 = vst.msk [vmem:[%s294 + $0x28] sm:$0xff] %vm336, %v1855
      %1888 = vst.msk [vmem:[%s294 + $0x38] sm:$0xff] %vm336, %v1858
      %1889 = vst.msk [vmem:[%s294 + $0x48] sm:$0xff] %vm336, %v1863
      %1890 = vst.msk [vmem:[%s294 + $0x58] sm:$0xff] %vm336, %v1866
      %1891 = vst.msk [vmem:[%s294 + $0x68] sm:$0xff] %vm336, %v1871
      %1892 = vst.msk [vmem:[%s294 + $0x78] sm:$0xff] %vm336, %v1874
      %s1893 = smul.u32 8, %s22
      %p1894 = scmp.lt.s32.totalorder %s21, 1
      %s1895 = scalar_select %p1894, %s21, 1
      %p1896 = scmp.lt.s32.totalorder %s1893, 15
      %s1897 = scalar_select %p1896, %s1893, 15
      %s1898 = smul.addr %s1897, 2
      %s1899 = smul.addr %s1895, 32
      %s1900 = sadd.s32 %s1898, %s1899
      %s1901 = smul.addr %s1900, 8
      %s1902 = scalar_lea.vmem %s6, %s1901
      // Predicated region
      $region45: #{_lambda_.1} parent=43 // pred_check
        %p1903 = pneg %p182
      $region46: #{_lambda_.1} parent=43 // pred_check_branch
        %1905 = sbr.rel (%p1903) target = $region48
      $region47: #{_lambda_.1} parent=43 // pred_region
        %s1906 = smul.u32 8, %s22
      $region48: #{_lambda_.1} parent=43 // pred_fallthru
        _
    $region44: #{_lambda_.1} parent=5 // pred_fallthru
      _
    %p1907 = scmp.le.s32.totalorder 2, %s12
    // Predicated region
    $region49: #{_lambda_.1} parent=5 // pred_check
      %p1908 = pneg %p1907
    $region50: #{_lambda_.1} parent=5 // pred_check_branch
      %1910 = sbr.rel (%p1908) target = $region52
    $region51: #{_lambda_.1} parent=5 // pred_region
      %s1911 = ssub.s32 %s12, 2
      // Predicated region
      $region53: #{_lambda_.1} parent=51 // pred_check
        %p1912 = pneg %p188
      $region54: #{_lambda_.1} parent=51 // pred_check_branch
        %1914 = sbr.rel (%p1912) target = $region56
      $region55: #{_lambda_.1} parent=51 // pred_region
        %s1915 = smul.u32 8, %s24
        %p1916 = scmp.lt.s32.totalorder %s23, 1
        %s1917 = scalar_select %p1916, %s23, 1
        %p1918 = scmp.lt.s32.totalorder %s1915, 15
        %s1919 = scalar_select %p1918, %s1915, 15
        %s1920 = smul.addr %s1919, 2
        %s1921 = smul.addr %s1917, 32
        %s1922 = sadd.s32 %s1920, %s1921
        %s1923 = smul.addr %s1922, 8
        %s1924 = scalar_lea.vmem %s6, %s1923
      $region56: #{_lambda_.1} parent=51 // pred_fallthru
        _
    $region52: #{_lambda_.1} parent=5 // pred_fallthru
      _
  $region6: #{_lambda_.1} parent=0 // loop_footer
    %s16 = sadd.s32 1, %s12
  $region7: #{_lambda_.1} parent=0 // loop_footer_branch
    %11 = sbr.rel target = $region3
  $region8: #{_lambda_.1} parent=0 // loop_exit
    _

</llo_original>
